<compile_context>
chip_gen: v6e
topology: v6e:2x2x1
jax: 0.10.0
libtpu: 0.0.40
codegen_flags: <defaults>
</compile_context>

<pallas_src>
import numpy as np
import jax
import jax.numpy as jnp
from jax import lax
from jax.experimental import pallas as pl
from jax.experimental.pallas import tpu as pltpu

KERNEL_SIZE = 11
SIGMA = 1.5
DATA_RANGE = 1.0
K1, K2 = 0.01, 0.03
C1 = (K1 * DATA_RANGE) ** 2
C2 = (K2 * DATA_RANGE) ** 2


def _gaussian_1d(kernel_size=KERNEL_SIZE, sigma=SIGMA):
    # Matches torchmetrics _gaussian(): normalized 1-D Gaussian.
    dist = np.arange((1 - kernel_size) / 2.0, (1 + kernel_size) / 2.0, 1.0,
                     dtype=np.float64)
    g = np.exp(-((dist / sigma) ** 2) / 2.0)
    return (g / g.sum()).astype(np.float32)


def _round_up(x, m):
    return (x + m - 1) // m * m


def _band_matrices(H, W, Wv_p):
    """Banded VALID-conv matrices: gh (Hv, H) for the sublane pass, gw (W, Wv_p) for
    the lane pass (columns beyond Wv are zero lane-padding), so filtered = gh@img@gw."""
    K = KERNEL_SIZE
    Hv, Wv = H - K + 1, W - K + 1
    g = _gaussian_1d()
    gh = np.zeros((Hv, H), np.float32)
    for u in range(Hv):
        gh[u, u:u + K] = g
    gw = np.zeros((W, Wv_p), np.float32)
    for v in range(Wv):
        gw[v:v + K, v] = g
    return gh, gw


def _vmem_limit_bytes():
    try:
        phys = int(pltpu.get_tpu_info().vmem_capacity_bytes)
    except Exception:
        phys = 64 * 1024 * 1024          # conservative v7x-sized fallback
    # ~72% of physical VMEM: ~92 MiB on v5e/v6e (128 MiB), ~46 MiB on v7x (64 MiB).
    return int(min(phys * 72 // 100, 92 * 1024 * 1024))


def _pick_tb(NC, H, W, Hv, Wv_p, in_itemsize, vmem_limit):
    # Per-step VMEM estimate (generous, to stay clear of compile-time VMEM failures).
    fixed = 8 * (Hv * H + W * Wv_p) + (1 << 20)       # double-buffered band matrices + slack
    per_img = (4 * H * W * in_itemsize                # p/t blocks, double-buffered
               + 36 * H * W                           # stacked f32 scratch + cast/product temps
               + 40 * H * Wv_p                        # lane-pass output (+ reshape slack)
               + 20 * Hv * H                          # in-kernel broadcast of gh
               + 52 * Hv * Wv_p)                      # sublane-pass output + elementwise temps
    budget = max(vmem_limit - fixed - (2 << 20), per_img)
    tb = max(1, budget // per_img)
    if NC >= 2:
        tb = min(tb, -(-NC // 2))        # >= 2 grid steps so both v7x TensorCores get work
    return int(min(tb, NC, 512))


def _make_kernel(TB, H, W, Hv, Wv, Wv_p, NC):
    B5 = 5 * TB
    ragged = (NC % TB) != 0
    lane_pad = Wv_p != Wv

    def kernel(gh_ref, gw_ref, p_ref, t_ref, o_ref, xs_ref):
        p = p_ref[...].astype(jnp.float32)            # (TB, H, W)
        t = t_ref[...].astype(jnp.float32)

        # Build the stacked operand [p, t, p*p, t*t, p*t] directly in VMEM scratch.
        xs_ref[0 * TB:1 * TB, :, :] = p
        xs_ref[1 * TB:2 * TB, :, :] = t
        xs_ref[2 * TB:3 * TB, :, :] = p * p
        xs_ref[3 * TB:4 * TB, :, :] = t * t
        xs_ref[4 * TB:5 * TB, :, :] = p * t

        # Lane (W) pass: one flattened MXU matmul against the shared 2-D band matrix.
        x_flat = xs_ref[...].reshape(B5 * H, W)
        y = jnp.dot(x_flat, gw_ref[...],
                    preferred_element_type=jnp.float32)          # (B5*H, Wv_p)
        y3 = y.reshape(B5, H, Wv_p)

        # Sublane (H) pass: batched MXU matmul against the shared (broadcast) 2-D gh.
        gh_b = jnp.broadcast_to(gh_ref[...], (B5, Hv, H))
        z = jnp.einsum('buh,bhv->buv', gh_b, y3,
                       preferred_element_type=jnp.float32)       # (B5, Hv, Wv_p)

        mu_p = z[0 * TB:1 * TB]
        mu_t = z[1 * TB:2 * TB]
        e_pp = z[2 * TB:3 * TB]
        e_tt = z[3 * TB:4 * TB]
        e_pt = z[4 * TB:5 * TB]

        mu_pp = mu_p * mu_p
        mu_tt = mu_t * mu_t
        mu_pt = mu_p * mu_t

        num = (2.0 * mu_pt + C1) * (2.0 * (e_pt - mu_pt) + C2)
        den = (mu_pp + mu_tt + C1) * ((e_pp - mu_pp) + (e_tt - mu_tt) + C2)

        inv = pl.reciprocal(den, approx=True)     # EUP slot (otherwise idle)
        inv = inv * (2.0 - den * inv)             # one Newton step -> f32 accuracy
        ssim_map = num * inv                      # (TB, Hv, Wv_p)

        # Mask ragged-tail images and zero-padded lane columns (both would bias the sum).
        mask = None
        if ragged:
            n_valid = NC - pl.program_id(0) * TB
            mask = lax.broadcasted_iota(jnp.int32, (TB, Hv, Wv_p), 0) < n_valid
        if lane_pad:
            vmask = lax.broadcasted_iota(jnp.int32, (TB, Hv, Wv_p), 2) < Wv
            mask = vmask if mask is None else jnp.logical_and(mask, vmask)
        if mask is not None:
            ssim_map = jnp.where(mask, ssim_map, 0.0)

        # Per-image partial sums, written as a lane-contiguous (1, 1, TB) block.
        s = jnp.sum(ssim_map, axis=2)             # (TB, Hv)
        s = jnp.sum(s, axis=1)                    # (TB,)
        o_ref[...] = s.reshape(1, 1, TB)

    return kernel


def ssim_loss(prediction, gt):
    """1 - SSIM(prediction, gt). Inputs are NCHW arrays (any float dtype)."""
    N, C, H, W = prediction.shape
    K = KERNEL_SIZE
    Hv, Wv = H - K + 1, W - K + 1
    assert Hv > 0 and Wv > 0, "spatial dims must exceed the 11x11 window"
    NC = N * C

    # Lane-pad the filtered width to a multiple of 128 only when the overhead is small
    # (<= 12.5% extra elementwise work); small images keep the exact Wv.
    Wv128 = _round_up(Wv, 128)
    Wv_p = Wv128 if (Wv128 - Wv) * 8 <= Wv else Wv

    # Keep the caller dtype in HBM (no wrapper cast, no wrapper padding).
    p = prediction.reshape(NC, H, W)
    t = gt.reshape(NC, H, W)

    vmem_limit = _vmem_limit_bytes()
    TB = _pick_tb(NC, H, W, Hv, Wv_p, jnp.dtype(p.dtype).itemsize, vmem_limit)
    G = -(-NC // TB)

    gh_np, gw_np = _band_matrices(H, W, Wv_p)
    gh = jnp.asarray(gh_np)
    gw = jnp.asarray(gw_np)

    per_block = pl.pallas_call(
        _make_kernel(TB, H, W, Hv, Wv, Wv_p, NC),
        out_shape=jax.ShapeDtypeStruct((G, 1, TB), jnp.float32),
        grid_spec=pltpu.PrefetchScalarGridSpec(
            num_scalar_prefetch=0,
            grid=(G,),
            in_specs=[
                pl.BlockSpec((Hv, H), lambda i: (0, 0)),        # gh (resident, tiny)
                pl.BlockSpec((W, Wv_p), lambda i: (0, 0)),      # gw (resident, tiny)
                pl.BlockSpec((TB, H, W), lambda i: (i, 0, 0)),  # prediction block
                pl.BlockSpec((TB, H, W), lambda i: (i, 0, 0)),  # gt block
            ],
            out_specs=pl.BlockSpec((1, 1, TB), lambda i: (i, 0, 0)),
            scratch_shapes=[pltpu.VMEM((5 * TB, H, W), jnp.float32)],
        ),
        compiler_params=pltpu.CompilerParams(
            dimension_semantics=("parallel",),     # independent per-step output blocks
            vmem_limit_bytes=vmem_limit,
        ),
    )(gh, gw, p, t)

    # Final mean: pairwise-safe reduction outside the kernel (masked entries are 0).
    total = jnp.sum(per_block)
    return 1.0 - total / float(NC * Hv * Wv)

# TODO(synk): very large H/W (multi-megapixel frames) would need spatial halo tiling
# along H; whole-image blocks + banded matrices here are sized for moderate images.


def ssim_loss_ref(prediction, gt):
    """Pure-JAX reference (same math, exact division, no Pallas)."""
    K = KERNEL_SIZE
    w = jnp.asarray(_gaussian_1d())
    N, C, H, W = prediction.shape
    Hv, Wv = H - K + 1, W - K + 1
    p = prediction.reshape(N * C, H, W).astype(jnp.float32)
    t = gt.reshape(N * C, H, W).astype(jnp.float32)

    def sep_conv(x):
        acc = sum(w[dx] * x[:, :, dx:dx + Wv] for dx in range(K))
        return sum(w[dy] * acc[:, dy:dy + Hv, :] for dy in range(K))

    mu_p, mu_t = sep_conv(p), sep_conv(t)
    e_pp, e_tt, e_pt = sep_conv(p * p), sep_conv(t * t), sep_conv(p * t)
    sigma_pp = e_pp - mu_p * mu_p
    sigma_tt = e_tt - mu_t * mu_t
    sigma_pt = e_pt - mu_p * mu_t
    ssim_map = ((2 * mu_p * mu_t + C1) * (2 * sigma_pt + C2)) / (
        (mu_p * mu_p + mu_t * mu_t + C1) * (sigma_pp + sigma_tt + C2))
    return 1.0 - jnp.mean(ssim_map)


if __name__ == "__main__":
    key = jax.random.PRNGKey(0)
    k1, k2 = jax.random.split(key)
    # Small NCHW shapes consistent with an image-metric forward pass.
    prediction = jax.random.uniform(k1, (2, 4, 16, 16), dtype=jnp.float32)
    gt = jax.random.uniform(k2, (2, 4, 16, 16), dtype=jnp.float32)

    loss = jax.block_until_ready(ssim_loss(prediction, gt))
    ref = jax.block_until_ready(ssim_loss_ref(prediction, gt))

    assert jnp.isfinite(loss), "non-finite loss"
    assert abs(float(loss) - float(ref)) < 1e-4, (float(loss), float(ref))
    print("KERNEL_OK")
</pallas_src>

<mosaic_0001>
module attributes {stable_mosaic.version = 11 : i64} {
  func.func @kernel(%arg0: i32, %arg1: memref<6x16xf32, #tpu.memory_space<vmem>>, %arg2: memref<16x6xf32, #tpu.memory_space<vmem>>, %arg3: memref<4x16x16xf32, #tpu.memory_space<vmem>>, %arg4: memref<4x16x16xf32, #tpu.memory_space<vmem>>, %arg5: memref<1x1x4xf32, #tpu.memory_space<vmem>>, %arg6: memref<20x16x16xf32, #tpu.memory_space<vmem>>) attributes {dimension_semantics = [#tpu.dimension_semantics<parallel>], iteration_bounds = array<i64: 2>, scalar_prefetch = 0 : i64, scratch_operands = 1 : i64, tpu.core_type = #tpu.core_type<tc>, window_params = [{pipeline_mode = #tpu.pipeline_mode<synchronous>, transform_indices = @transform_0, window_bounds = array<i64: 6, 16>}, {pipeline_mode = #tpu.pipeline_mode<synchronous>, transform_indices = @transform_1, window_bounds = array<i64: 16, 6>}, {transform_indices = @transform_2, window_bounds = array<i64: 4, 16, 16>}, {transform_indices = @transform_3, window_bounds = array<i64: 4, 16, 16>}, {transform_indices = @transform_4, window_bounds = array<i64: 1, 1, 4>}]} {
    %c0 = arith.constant 0 : index
    %c0_0 = arith.constant 0 : index
    %c0_1 = arith.constant 0 : index
    %0 = vector.load %arg3[%c0, %c0_0, %c0_1] : memref<4x16x16xf32, #tpu.memory_space<vmem>>, vector<4x16x16xf32>
    %c0_2 = arith.constant 0 : index
    %c0_3 = arith.constant 0 : index
    %c0_4 = arith.constant 0 : index
    %1 = vector.load %arg4[%c0_2, %c0_3, %c0_4] : memref<4x16x16xf32, #tpu.memory_space<vmem>>, vector<4x16x16xf32>
    %c0_5 = arith.constant 0 : index
    %c0_6 = arith.constant 0 : index
    %c0_7 = arith.constant 0 : index
    %2 = vector.load %arg6[%c0_5, %c0_6, %c0_7] : memref<20x16x16xf32, #tpu.memory_space<vmem>>, vector<4x16x16xf32>
    tpu.vector_store %arg6[%c0_5, %c0_6, %c0_7], %0 {strides = array<i32>} : memref<20x16x16xf32, #tpu.memory_space<vmem>>, vector<4x16x16xf32>,
    %c4 = arith.constant 4 : index
    %c0_8 = arith.constant 0 : index
    %c0_9 = arith.constant 0 : index
    %3 = vector.load %arg6[%c4, %c0_8, %c0_9] : memref<20x16x16xf32, #tpu.memory_space<vmem>>, vector<4x16x16xf32>
    tpu.vector_store %arg6[%c4, %c0_8, %c0_9], %1 {strides = array<i32>} : memref<20x16x16xf32, #tpu.memory_space<vmem>>, vector<4x16x16xf32>,
    %4 = arith.mulf %0, %0 : vector<4x16x16xf32>
    %c8 = arith.constant 8 : index
    %c0_10 = arith.constant 0 : index
    %c0_11 = arith.constant 0 : index
    %5 = vector.load %arg6[%c8, %c0_10, %c0_11] : memref<20x16x16xf32, #tpu.memory_space<vmem>>, vector<4x16x16xf32>
    tpu.vector_store %arg6[%c8, %c0_10, %c0_11], %4 {strides = array<i32>} : memref<20x16x16xf32, #tpu.memory_space<vmem>>, vector<4x16x16xf32>,
    %6 = arith.mulf %1, %1 : vector<4x16x16xf32>
    %c12 = arith.constant 12 : index
    %c0_12 = arith.constant 0 : index
    %c0_13 = arith.constant 0 : index
    %7 = vector.load %arg6[%c12, %c0_12, %c0_13] : memref<20x16x16xf32, #tpu.memory_space<vmem>>, vector<4x16x16xf32>
    tpu.vector_store %arg6[%c12, %c0_12, %c0_13], %6 {strides = array<i32>} : memref<20x16x16xf32, #tpu.memory_space<vmem>>, vector<4x16x16xf32>,
    %8 = arith.mulf %0, %1 : vector<4x16x16xf32>
    %c16 = arith.constant 16 : index
    %c0_14 = arith.constant 0 : index
    %c0_15 = arith.constant 0 : index
    %9 = vector.load %arg6[%c16, %c0_14, %c0_15] : memref<20x16x16xf32, #tpu.memory_space<vmem>>, vector<4x16x16xf32>
    tpu.vector_store %arg6[%c16, %c0_14, %c0_15], %8 {strides = array<i32>} : memref<20x16x16xf32, #tpu.memory_space<vmem>>, vector<4x16x16xf32>,
    %c0_16 = arith.constant 0 : index
    %c0_17 = arith.constant 0 : index
    %c0_18 = arith.constant 0 : index
    %10 = vector.load %arg6[%c0_16, %c0_17, %c0_18] : memref<20x16x16xf32, #tpu.memory_space<vmem>>, vector<20x16x16xf32>
    %11 = vector.shape_cast %10 : vector<20x16x16xf32> to vector<320x16xf32>
    %c0_19 = arith.constant 0 : index
    %c0_20 = arith.constant 0 : index
    %12 = vector.load %arg2[%c0_19, %c0_20] : memref<16x6xf32, #tpu.memory_space<vmem>>, vector<16x6xf32>
    %cst = arith.constant dense<0.000000e+00> : vector<320x6xf32>
    %13 = tpu.matmul %11, %12, %cst {dimension_numbers = #tpu.dot_dimension_numbers<[1], [0], [0], [1], [0, 0, 1, 1], [], []>} : vector<320x16xf32>, vector<16x6xf32>, vector<320x6xf32> -> vector<320x6xf32>
    %14 = vector.shape_cast %13 : vector<320x6xf32> to vector<20x16x6xf32>
    %c0_21 = arith.constant 0 : index
    %c0_22 = arith.constant 0 : index
    %15 = vector.load %arg1[%c0_21, %c0_22] : memref<6x16xf32, #tpu.memory_space<vmem>>, vector<6x16xf32>
    %16 = vector.shape_cast %15 : vector<6x16xf32> to vector<1x6x16xf32>
    %17 = vector.broadcast %16 : vector<1x6x16xf32> to vector<20x6x16xf32>
    "tpu.trace_start"() <{level = 10 : i32, message = "buh,bhv->buv"}> : () -> ()
    %cst_23 = arith.constant dense<0.000000e+00> : vector<20x6x6xf32>
    %18 = tpu.matmul %17, %14, %cst_23 {dimension_numbers = #tpu.dot_dimension_numbers<[2], [1], [1], [2], [0, 0, 0, 1, 1, 2], [0], [0]>} : vector<20x6x16xf32>, vector<20x16x6xf32>, vector<20x6x6xf32> -> vector<20x6x6xf32>
    "tpu.trace_stop"() : () -> ()
    %19 = vector.extract_strided_slice %18 {offsets = [0, 0, 0], sizes = [4, 6, 6], strides = [1, 1, 1]} : vector<20x6x6xf32> to vector<4x6x6xf32>
    %20 = vector.extract_strided_slice %18 {offsets = [4, 0, 0], sizes = [4, 6, 6], strides = [1, 1, 1]} : vector<20x6x6xf32> to vector<4x6x6xf32>
    %21 = vector.extract_strided_slice %18 {offsets = [8, 0, 0], sizes = [4, 6, 6], strides = [1, 1, 1]} : vector<20x6x6xf32> to vector<4x6x6xf32>
    %22 = vector.extract_strided_slice %18 {offsets = [12, 0, 0], sizes = [4, 6, 6], strides = [1, 1, 1]} : vector<20x6x6xf32> to vector<4x6x6xf32>
    %23 = vector.extract_strided_slice %18 {offsets = [16, 0, 0], sizes = [4, 6, 6], strides = [1, 1, 1]} : vector<20x6x6xf32> to vector<4x6x6xf32>
    %24 = arith.mulf %19, %19 : vector<4x6x6xf32>
    %25 = arith.mulf %20, %20 : vector<4x6x6xf32>
    %26 = arith.mulf %19, %20 : vector<4x6x6xf32>
    %cst_24 = arith.constant 2.000000e+00 : f32
    %27 = vector.broadcast %cst_24 : f32 to vector<4x6x6xf32>
    %28 = arith.mulf %27, %26 : vector<4x6x6xf32>
    %cst_25 = arith.constant 9.99999974E-5 : f32
    %29 = vector.broadcast %cst_25 : f32 to vector<4x6x6xf32>
    %30 = arith.addf %28, %29 : vector<4x6x6xf32>
    %31 = arith.subf %23, %26 : vector<4x6x6xf32>
    %cst_26 = arith.constant 2.000000e+00 : f32
    %32 = vector.broadcast %cst_26 : f32 to vector<4x6x6xf32>
    %33 = arith.mulf %32, %31 : vector<4x6x6xf32>
    %cst_27 = arith.constant 8.99999984E-4 : f32
    %34 = vector.broadcast %cst_27 : f32 to vector<4x6x6xf32>
    %35 = arith.addf %33, %34 : vector<4x6x6xf32>
    %36 = arith.mulf %30, %35 : vector<4x6x6xf32>
    %37 = arith.addf %24, %25 : vector<4x6x6xf32>
    %cst_28 = arith.constant 9.99999974E-5 : f32
    %38 = vector.broadcast %cst_28 : f32 to vector<4x6x6xf32>
    %39 = arith.addf %37, %38 : vector<4x6x6xf32>
    %40 = arith.subf %21, %24 : vector<4x6x6xf32>
    %41 = arith.subf %22, %25 : vector<4x6x6xf32>
    %42 = arith.addf %40, %41 : vector<4x6x6xf32>
    %cst_29 = arith.constant 8.99999984E-4 : f32
    %43 = vector.broadcast %cst_29 : f32 to vector<4x6x6xf32>
    %44 = arith.addf %42, %43 : vector<4x6x6xf32>
    %45 = arith.mulf %39, %44 : vector<4x6x6xf32>
    %46 = tpu.reciprocal %45 {approx = true} : vector<4x6x6xf32> -> vector<4x6x6xf32>
    %47 = arith.mulf %45, %46 : vector<4x6x6xf32>
    %cst_30 = arith.constant 2.000000e+00 : f32
    %48 = vector.broadcast %cst_30 : f32 to vector<4x6x6xf32>
    %49 = arith.subf %48, %47 : vector<4x6x6xf32>
    %50 = arith.mulf %46, %49 : vector<4x6x6xf32>
    %51 = arith.mulf %36, %50 : vector<4x6x6xf32>
    %cst_31 = arith.constant dense<0.000000e+00> : vector<4x6xf32>
    %52 = vector.multi_reduction <add>, %51, %cst_31 [2] : vector<4x6x6xf32> to vector<4x6xf32>
    %cst_32 = arith.constant dense<0.000000e+00> : vector<4xf32>
    %53 = vector.multi_reduction <add>, %52, %cst_32 [1] : vector<4x6xf32> to vector<4xf32>
    %54 = vector.shape_cast %53 : vector<4xf32> to vector<1x1x4xf32>
    %c0_33 = arith.constant 0 : index
    %c0_34 = arith.constant 0 : index
    %c0_35 = arith.constant 0 : index
    %55 = vector.load %arg5[%c0_33, %c0_34, %c0_35] : memref<1x1x4xf32, #tpu.memory_space<vmem>>, vector<1x1x4xf32>
    tpu.vector_store %arg5[%c0_33, %c0_34, %c0_35], %54 {strides = array<i32>} : memref<1x1x4xf32, #tpu.memory_space<vmem>>, vector<1x1x4xf32>,
    return
  }
  func.func @transform_0(%arg0: i32) -> (i32, i32) {
    %c0_i32 = arith.constant 0 : i32
    %c0_i32_0 = arith.constant 0 : i32
    %c0_i32_1 = arith.constant 0 : i32
    return %c0_i32, %c0_i32_0 : i32, i32
  }
  func.func @transform_1(%arg0: i32) -> (i32, i32) {
    %c0_i32 = arith.constant 0 : i32
    %c0_i32_0 = arith.constant 0 : i32
    %c0_i32_1 = arith.constant 0 : i32
    return %c0_i32, %c0_i32_0 : i32, i32
  }
  func.func @transform_2(%arg0: i32) -> (i32, i32, i32) {
    %c0_i32 = arith.constant 0 : i32
    %c0_i32_0 = arith.constant 0 : i32
    %c0_i32_1 = arith.constant 0 : i32
    return %arg0, %c0_i32, %c0_i32_0 : i32, i32, i32
  }
  func.func @transform_3(%arg0: i32) -> (i32, i32, i32) {
    %c0_i32 = arith.constant 0 : i32
    %c0_i32_0 = arith.constant 0 : i32
    %c0_i32_1 = arith.constant 0 : i32
    return %arg0, %c0_i32, %c0_i32_0 : i32, i32, i32
  }
  func.func @transform_4(%arg0: i32) -> (i32, i32, i32) {
    %c0_i32 = arith.constant 0 : i32
    %c0_i32_0 = arith.constant 0 : i32
    %c0_i32_1 = arith.constant 0 : i32
    return %arg0, %c0_i32, %c0_i32_0 : i32, i32, i32
  }
}

</mosaic_0001>

<llo_original>
// kernel: tpu_custom_call.1
$region0: #{tpu_custom_call.1}
  #allocation0 [shape = 'u32[]', space=smem, size = 0x4, offset = 0x4, fixed_abs, tag = 'smem constant byte address 0x4 - core index']
  #allocation1 [shape = 'u32[144,128]{1,0:T(1,128)}', space=vmem, size = 0x12000, scoped, tag = 'internal scratch']
  #allocation2 [shape = 'f32[20,16,16]{2,1,0:T(8,128)}', space=vmem, size = 0x28000, scoped, tag = 'scratch operand']
  %s0 = inlined_call_operand.vmem [shape: f32[6,16], index: 0, kind: input, shape index: {}]
  %s1 = inlined_call_operand.vmem [shape: f32[16,6], index: 1, kind: input, shape index: {}]
  %s2 = inlined_call_operand.hbm [shape: f32[8,16,16], index: 2, kind: input, shape index: {}]
  %s3 = inlined_call_operand.hbm [shape: f32[8,16,16], index: 3, kind: input, shape index: {}]
  %s4 = inlined_call_operand.hbm [shape: f32[2,1,4], index: 4, kind: output, shape index: {}]
  %s5 = sld [smem:[#allocation0]]
  $region57: #{tpu_custom_call.1} parent=0
    _
  %s7 = ssub.s32 1, %s5
  %s8 = scalar_select 0, %s7, %s5
  $region1: #{tpu_custom_call.1} parent=0
    #allocation3 [shape = 'u8[65536]{0}', space=vmem, size = 0x10000, scoped, tag = 'input window, operand 2']
    #allocation4 [shape = 's32[2]{0}', space=sflag, size = 0x8, scoped, tag = 'scoped memory for tpu_custom_call.1']
    #allocation5 [shape = 's32[2]{0}', space=sflag, size = 0x8, scoped, tag = 'scoped memory for tpu_custom_call.1']
    #allocation6 [shape = 'u8[65536]{0}', space=vmem, size = 0x10000, scoped, tag = 'input window, operand 3']
    #allocation7 [shape = 's32[2]{0}', space=sflag, size = 0x8, scoped, tag = 'scoped memory for tpu_custom_call.1']
    #allocation8 [shape = 'u8[1024]{0}', space=vmem, size = 0x400, scoped, tag = 'output window, operand 0']
    %9 = vsyncpa [#allocation4], 0
    %s10 = scalar_lea.sflag [#allocation4], 1
    %11 = vsyncpa %s10, 0
    %12 = vsyncpa [#allocation7], 0
    %s13 = scalar_lea.sflag [#allocation7], 1
    %14 = vsyncpa %s13, 0
    %15 = vsyncpa [#allocation5], 0
    %s16 = scalar_lea.sflag [#allocation5], 1
    %17 = vsyncpa %s16, 0
    loop: start=0, step=1, limit=4
    $region2: #{tpu_custom_call.1} parent=1 // loop_pre_header
      _
    $region3: #{tpu_custom_call.1} parent=1 // loop_header
      %s19 = sphi 0, %s23
      %p20 = scmp.ge.s32.totalorder %s19, 4
      %s27 = sphi 0, %s27
      %s29 = sphi 0, %s27
      %s30 = sphi 0, %s29
      %s44 = sphi 0, %s30
      %s48 = sphi 0, %s48
      %s50 = sphi 0, %s48
      %s51 = sphi 0, %s50
      %s65 = sphi 0, %s51
      %s71 = sphi 0, %s73
      %s74 = sphi 0, %s71
      %s75 = sphi 0, %s74
      %s91 = sphi 0, %s75
      %s97 = sphi 0, %s99
      %s100 = sphi 0, %s97
      %s101 = sphi 0, %s100
      %s117 = sphi 0, %s101
      %s123 = sphi 0, %s125
      %s126 = sphi 0, %s123
      %s127 = sphi 0, %s126
      %s143 = sphi 0, %s127
    $region4: #{tpu_custom_call.1} parent=1 // loop_header_branch
      %22 = sbr.rel (%p20) target = $region8
    $region5: #{tpu_custom_call.1} parent=1 // loop_body
      %s24 = ssub.s32 %s19, 1
      %s25 = ssub.s32 %s19, 2
      %s26 = sadd.s32 %s19, 1
      %s28 = sadd.s32 %s27, 1
      %p31 = scmp.eq.s32.totalorder %s19, 1
      %p32 = scmp.ne.s32.totalorder %s27, %s29
      %p33 = scmp.eq.s32.totalorder %s19, 0
      %p34 = por %p32, %p33
      %p35 = scmp.ne.s32.totalorder %s27, %s29
      %p36 = scmp.eq.s32.totalorder %s24, 1
      %p37 = por %p35, %p36
      %p38 = scmp.ne.s32.totalorder %s29, %s30
      %p39 = scmp.eq.s32.totalorder %s24, 0
      %p40 = por %p38, %p39
      %p41 = scmp.ne.s32.totalorder %s29, %s30
      %p42 = scmp.eq.s32.totalorder %s25, 1
      %p43 = por %p41, %p42
      %p45 = scmp.ne.s32.totalorder %s30, %s44
      %p46 = scmp.eq.s32.totalorder %s25, 0
      %p47 = por %p45, %p46
      %s49 = sadd.s32 %s48, 1
      %p52 = scmp.eq.s32.totalorder %s19, 1
      %p53 = scmp.ne.s32.totalorder %s48, %s50
      %p54 = scmp.eq.s32.totalorder %s19, 0
      %p55 = por %p53, %p54
      %p56 = scmp.ne.s32.totalorder %s48, %s50
      %p57 = scmp.eq.s32.totalorder %s24, 1
      %p58 = por %p56, %p57
      %p59 = scmp.ne.s32.totalorder %s50, %s51
      %p60 = scmp.eq.s32.totalorder %s24, 0
      %p61 = por %p59, %p60
      %p62 = scmp.ne.s32.totalorder %s50, %s51
      %p63 = scmp.eq.s32.totalorder %s25, 1
      %p64 = por %p62, %p63
      %p66 = scmp.ne.s32.totalorder %s51, %s65
      %p67 = scmp.eq.s32.totalorder %s25, 0
      %p68 = por %p66, %p67
      %s69 = ssub.s32 %s19, %s26
      %p70 = scmp.eq.s32.totalorder %s69, 0
      %s72 = sadd.s32 %s71, 1
      %s73 = scalar_select %p70, %s71, %s72
      %p76 = pneg %p70
      %p77 = scmp.eq.s32.totalorder %s19, 1
      %p78 = por %p76, %p77
      %p79 = scmp.ne.s32.totalorder %s71, %s74
      %p80 = scmp.eq.s32.totalorder %s19, 0
      %p81 = por %p79, %p80
      %p82 = scmp.ne.s32.totalorder %s71, %s74
      %p83 = scmp.eq.s32.totalorder %s24, 1
      %p84 = por %p82, %p83
      %p85 = scmp.ne.s32.totalorder %s74, %s75
      %p86 = scmp.eq.s32.totalorder %s24, 0
      %p87 = por %p85, %p86
      %p88 = scmp.ne.s32.totalorder %s74, %s75
      %p89 = scmp.eq.s32.totalorder %s25, 1
      %p90 = por %p88, %p89
      %p92 = scmp.ne.s32.totalorder %s75, %s91
      %p93 = scmp.eq.s32.totalorder %s25, 0
      %p94 = por %p92, %p93
      %s95 = ssub.s32 %s19, %s26
      %p96 = scmp.eq.s32.totalorder %s95, 0
      %s98 = sadd.s32 %s97, 1
      %s99 = scalar_select %p96, %s97, %s98
      %p102 = pneg %p96
      %p103 = scmp.eq.s32.totalorder %s19, 1
      %p104 = por %p102, %p103
      %p105 = scmp.ne.s32.totalorder %s97, %s100
      %p106 = scmp.eq.s32.totalorder %s19, 0
      %p107 = por %p105, %p106
      %p108 = scmp.ne.s32.totalorder %s97, %s100
      %p109 = scmp.eq.s32.totalorder %s24, 1
      %p110 = por %p108, %p109
      %p111 = scmp.ne.s32.totalorder %s100, %s101
      %p112 = scmp.eq.s32.totalorder %s24, 0
      %p113 = por %p111, %p112
      %p114 = scmp.ne.s32.totalorder %s100, %s101
      %p115 = scmp.eq.s32.totalorder %s25, 1
      %p116 = por %p114, %p115
      %p118 = scmp.ne.s32.totalorder %s101, %s117
      %p119 = scmp.eq.s32.totalorder %s25, 0
      %p120 = por %p118, %p119
      %s121 = ssub.s32 %s19, %s26
      %p122 = scmp.eq.s32.totalorder %s121, 0
      %s124 = sadd.s32 %s123, 1
      %s125 = scalar_select %p122, %s123, %s124
      %p128 = pneg %p122
      %p129 = scmp.eq.s32.totalorder %s19, 1
      %p130 = por %p128, %p129
      %p131 = scmp.ne.s32.totalorder %s123, %s126
      %p132 = scmp.eq.s32.totalorder %s19, 0
      %p133 = por %p131, %p132
      %p134 = scmp.ne.s32.totalorder %s123, %s126
      %p135 = scmp.eq.s32.totalorder %s24, 1
      %p136 = por %p134, %p135
      %p137 = scmp.ne.s32.totalorder %s126, %s127
      %p138 = scmp.eq.s32.totalorder %s24, 0
      %p139 = por %p137, %p138
      %p140 = scmp.ne.s32.totalorder %s126, %s127
      %p141 = scmp.eq.s32.totalorder %s25, 1
      %p142 = por %p140, %p141
      %p144 = scmp.ne.s32.totalorder %s127, %s143
      %p145 = scmp.eq.s32.totalorder %s25, 0
      %p146 = por %p144, %p145
      %p147 = scmp.le.s32.totalorder 1, %s19
      %p148 = scmp.lt.s32.totalorder %s19, 3
      %p149 = pnand %p147, %p148
      %p150 = pneg %p149
      // Predicated region
      $region9: #{tpu_custom_call.1} parent=5 // pred_check
        _
      $region10: #{tpu_custom_call.1} parent=5 // pred_check_branch
        %152 = sbr.rel (%p149) target = $region12
      $region11: #{tpu_custom_call.1} parent=5 // pred_region
        %s153 = ssub.s32 %s19, 1
        // Predicated region
        $region13: #{tpu_custom_call.1} parent=11 // pred_check
          %p154 = pneg %p40
        $region14: #{tpu_custom_call.1} parent=11 // pred_check_branch
          %156 = sbr.rel (%p154) target = $region16
        $region15: #{tpu_custom_call.1} parent=11 // pred_region
          _
        $region16: #{tpu_custom_call.1} parent=11 // pred_fallthru
          _
        // Predicated region
        $region17: #{tpu_custom_call.1} parent=11 // pred_check
          %p157 = pneg %p61
        $region18: #{tpu_custom_call.1} parent=11 // pred_check_branch
          %159 = sbr.rel (%p157) target = $region20
        $region19: #{tpu_custom_call.1} parent=11 // pred_region
          _
        $region20: #{tpu_custom_call.1} parent=11 // pred_fallthru
          _
      $region12: #{tpu_custom_call.1} parent=5 // pred_fallthru
        _
      %p160 = scmp.lt.s32.totalorder %s19, 2
      // Predicated region
      $region21: #{tpu_custom_call.1} parent=5 // pred_check
        %p161 = pneg %p160
      $region22: #{tpu_custom_call.1} parent=5 // pred_check_branch
        %163 = sbr.rel (%p161) target = $region24
      $region23: #{tpu_custom_call.1} parent=5 // pred_region
        // Predicated region
        $region25: #{tpu_custom_call.1} parent=23 // pred_check
          %p164 = pneg %p81
        $region26: #{tpu_custom_call.1} parent=23 // pred_check_branch
          %166 = sbr.rel (%p164) target = $region28
        $region27: #{tpu_custom_call.1} parent=23 // pred_region
          %s167 = sand.u32 %s71, 1
          %s168 = scalar_lea.sflag [#allocation4], %s167
          %s169 = sand.u32 %s71, 1
          %s170 = smul.addr %s169, 64
          %s171 = scalar_lea.vmem [#allocation3], %s170
          %s172 = smul.u32 4, %s19
          %s174 = ssub.s32 1024, 1024
          %175 = vsyncadd %s168, %s174
          %s176 = smul.addr %s172, 2
          %s177 = smul.addr %s176, 128
          %s178 = scalar_lea.hbm %s2, %s177
          %s179 = sshll.u32 %s171, 4
          %s180 = int_to_ptr.vmem [resolvable:$true] %s179
          %185 = dma.hbm_to_vmem [thread:$0]  %s178, 1024, %s180, %s168, 128, 128, 8
        $region28: #{tpu_custom_call.1} parent=23 // pred_fallthru
          _
        // Predicated region
        $region29: #{tpu_custom_call.1} parent=23 // pred_check
          %p186 = pneg %p107
        $region30: #{tpu_custom_call.1} parent=23 // pred_check_branch
          %188 = sbr.rel (%p186) target = $region32
        $region31: #{tpu_custom_call.1} parent=23 // pred_region
          %s189 = sand.u32 %s97, 1
          %s190 = scalar_lea.sflag [#allocation7], %s189
          %s191 = sand.u32 %s97, 1
          %s192 = smul.addr %s191, 64
          %s193 = scalar_lea.vmem [#allocation6], %s192
          %s194 = smul.u32 4, %s19
          %s196 = ssub.s32 1024, 1024
          %197 = vsyncadd %s190, %s196
          %s198 = smul.addr %s194, 2
          %s199 = smul.addr %s198, 128
          %s200 = scalar_lea.hbm %s3, %s199
          %s201 = sshll.u32 %s193, 4
          %s202 = int_to_ptr.vmem [resolvable:$true] %s201
          %207 = dma.hbm_to_vmem [thread:$0]  %s200, 1024, %s202, %s190, 128, 128, 8
        $region32: #{tpu_custom_call.1} parent=23 // pred_fallthru
          _
      $region24: #{tpu_custom_call.1} parent=5 // pred_fallthru
        _
      %p208 = scmp.le.s32.totalorder 1, %s19
      %p209 = scmp.lt.s32.totalorder %s19, 3
      %p210 = pnand %p208, %p209
      %p211 = pneg %p210
      // Predicated region
      $region33: #{tpu_custom_call.1} parent=5 // pred_check
        _
      $region34: #{tpu_custom_call.1} parent=5 // pred_check_branch
        %213 = sbr.rel (%p210) target = $region36
      $region35: #{tpu_custom_call.1} parent=5 // pred_region
        %s214 = ssub.s32 %s19, 1
        %s215 = sand.u32 %s74, 1
        %s216 = scalar_lea.sflag [#allocation4], %s215
        %s217 = sand.u32 %s74, 1
        %s218 = smul.addr %s217, 64
        %s219 = scalar_lea.vmem [#allocation3], %s218
        // Predicated region
        $region37: #{tpu_custom_call.1} parent=35 // pred_check
          %p220 = pneg %p87
        $region38: #{tpu_custom_call.1} parent=35 // pred_check_branch
          %222 = sbr.rel (%p220) target = $region40
        $region39: #{tpu_custom_call.1} parent=35 // pred_region
          %223 = dma.done %s216, 1024
        $region40: #{tpu_custom_call.1} parent=35 // pred_fallthru
          _
        %s224 = sand.u32 %s100, 1
        %s225 = scalar_lea.sflag [#allocation7], %s224
        %s226 = sand.u32 %s100, 1
        %s227 = smul.addr %s226, 64
        %s228 = scalar_lea.vmem [#allocation6], %s227
        // Predicated region
        $region41: #{tpu_custom_call.1} parent=35 // pred_check
          %p229 = pneg %p113
        $region42: #{tpu_custom_call.1} parent=35 // pred_check_branch
          %231 = sbr.rel (%p229) target = $region44
        $region43: #{tpu_custom_call.1} parent=35 // pred_region
          %232 = dma.done %s225, 1024
        $region44: #{tpu_custom_call.1} parent=35 // pred_fallthru
          _
        %p233 = pneg %p40
        %p234 = pneg %p37
        %p235 = pneg %p61
        %p236 = pneg %p58
        %s237 = sand.u32 %s74, 1
        %s238 = scalar_lea.sflag [#allocation4], %s237
        %s239 = sand.u32 %s74, 1
        %s240 = smul.addr %s239, 64
        %s241 = scalar_lea.vmem [#allocation3], %s240
        %p242 = pneg %p87
        %p243 = pneg %p84
        %s244 = sand.u32 %s100, 1
        %s245 = scalar_lea.sflag [#allocation7], %s244
        %s246 = sand.u32 %s100, 1
        %s247 = smul.addr %s246, 64
        %s248 = scalar_lea.vmem [#allocation6], %s247
        %p249 = pneg %p113
        %p250 = pneg %p110
        %p251 = pneg %p139
        %p252 = pneg %p136
        %s253 = sand.u32 %s126, 1
        %s254 = scalar_lea.sflag [#allocation5], %s253
        %s255 = sand.u32 %s126, 1
        %s256 = scalar_lea.vmem [#allocation8], %s255
        %s257 = smul.u32 4, %s24
        %s258 = smul.u32 4, %s24
        %v259 = vld [vmem:[%s219] sm:$0xff]
        %v260 = vld [vmem:[%s219 + $0x8] sm:$0xff]
        %v261 = vld [vmem:[%s219 + $0x10] sm:$0xff]
        %v262 = vld [vmem:[%s219 + $0x18] sm:$0xff]
        %v263 = vld [vmem:[%s219 + $0x20] sm:$0xff]
        %v264 = vld [vmem:[%s219 + $0x28] sm:$0xff]
        %v265 = vld [vmem:[%s219 + $0x30] sm:$0xff]
        %v266 = vld [vmem:[%s219 + $0x38] sm:$0xff]
        %v267 = vld [vmem:[%s228] sm:$0xff]
        %v268 = vld [vmem:[%s228 + $0x8] sm:$0xff]
        %v269 = vld [vmem:[%s228 + $0x10] sm:$0xff]
        %v270 = vld [vmem:[%s228 + $0x18] sm:$0xff]
        %v271 = vld [vmem:[%s228 + $0x20] sm:$0xff]
        %v272 = vld [vmem:[%s228 + $0x28] sm:$0xff]
        %v273 = vld [vmem:[%s228 + $0x30] sm:$0xff]
        %v274 = vld [vmem:[%s228 + $0x38] sm:$0xff]
        %vm275 = vcmask 130048
        %276 = vst.msk [vmem:[#allocation2] sm:$0xff] %vm275, %v259
        %277 = vst.msk [vmem:[#allocation2 + $0x8] sm:$0xff] %vm275, %v260
        %278 = vst.msk [vmem:[#allocation2 + $0x10] sm:$0xff] %vm275, %v261
        %279 = vst.msk [vmem:[#allocation2 + $0x18] sm:$0xff] %vm275, %v262
        %280 = vst.msk [vmem:[#allocation2 + $0x20] sm:$0xff] %vm275, %v263
        %281 = vst.msk [vmem:[#allocation2 + $0x28] sm:$0xff] %vm275, %v264
        %282 = vst.msk [vmem:[#allocation2 + $0x30] sm:$0xff] %vm275, %v265
        %283 = vst.msk [vmem:[#allocation2 + $0x38] sm:$0xff] %vm275, %v266
        %s284 = scalar_lea.vmem [#allocation2], 64
        %285 = vst.msk [vmem:[%s284] sm:$0xff] %vm275, %v267
        %286 = vst.msk [vmem:[%s284 + $0x8] sm:$0xff] %vm275, %v268
        %287 = vst.msk [vmem:[%s284 + $0x10] sm:$0xff] %vm275, %v269
        %288 = vst.msk [vmem:[%s284 + $0x18] sm:$0xff] %vm275, %v270
        %289 = vst.msk [vmem:[%s284 + $0x20] sm:$0xff] %vm275, %v271
        %290 = vst.msk [vmem:[%s284 + $0x28] sm:$0xff] %vm275, %v272
        %291 = vst.msk [vmem:[%s284 + $0x30] sm:$0xff] %vm275, %v273
        %292 = vst.msk [vmem:[%s284 + $0x38] sm:$0xff] %vm275, %v274
        %v293 = vmul.f32 %v259, %v259
        %v294 = vmul.f32 %v260, %v260
        %v295 = vmul.f32 %v261, %v261
        %v296 = vmul.f32 %v262, %v262
        %v297 = vmul.f32 %v263, %v263
        %v298 = vmul.f32 %v264, %v264
        %v299 = vmul.f32 %v265, %v265
        %v300 = vmul.f32 %v266, %v266
        %s301 = scalar_lea.vmem [#allocation2], 128
        %302 = vst.msk [vmem:[%s301] sm:$0xff] %vm275, %v293
        %303 = vst.msk [vmem:[%s301 + $0x8] sm:$0xff] %vm275, %v294
        %304 = vst.msk [vmem:[%s301 + $0x10] sm:$0xff] %vm275, %v295
        %305 = vst.msk [vmem:[%s301 + $0x18] sm:$0xff] %vm275, %v296
        %306 = vst.msk [vmem:[%s301 + $0x20] sm:$0xff] %vm275, %v297
        %307 = vst.msk [vmem:[%s301 + $0x28] sm:$0xff] %vm275, %v298
        %308 = vst.msk [vmem:[%s301 + $0x30] sm:$0xff] %vm275, %v299
        %309 = vst.msk [vmem:[%s301 + $0x38] sm:$0xff] %vm275, %v300
        %v310 = vmul.f32 %v267, %v267
        %v311 = vmul.f32 %v268, %v268
        %v312 = vmul.f32 %v269, %v269
        %v313 = vmul.f32 %v270, %v270
        %v314 = vmul.f32 %v271, %v271
        %v315 = vmul.f32 %v272, %v272
        %v316 = vmul.f32 %v273, %v273
        %v317 = vmul.f32 %v274, %v274
        %s318 = scalar_lea.vmem [#allocation2], 192
        %319 = vst.msk [vmem:[%s318] sm:$0xff] %vm275, %v310
        %320 = vst.msk [vmem:[%s318 + $0x8] sm:$0xff] %vm275, %v311
        %321 = vst.msk [vmem:[%s318 + $0x10] sm:$0xff] %vm275, %v312
        %322 = vst.msk [vmem:[%s318 + $0x18] sm:$0xff] %vm275, %v313
        %323 = vst.msk [vmem:[%s318 + $0x20] sm:$0xff] %vm275, %v314
        %324 = vst.msk [vmem:[%s318 + $0x28] sm:$0xff] %vm275, %v315
        %325 = vst.msk [vmem:[%s318 + $0x30] sm:$0xff] %vm275, %v316
        %326 = vst.msk [vmem:[%s318 + $0x38] sm:$0xff] %vm275, %v317
        %v327 = vmul.f32 %v259, %v267
        %v328 = vmul.f32 %v260, %v268
        %v329 = vmul.f32 %v261, %v269
        %v330 = vmul.f32 %v262, %v270
        %v331 = vmul.f32 %v263, %v271
        %v332 = vmul.f32 %v264, %v272
        %v333 = vmul.f32 %v265, %v273
        %v334 = vmul.f32 %v266, %v274
        %s335 = scalar_lea.vmem [#allocation2], 256
        %336 = vst.msk [vmem:[%s335] sm:$0xff] %vm275, %v327
        %337 = vst.msk [vmem:[%s335 + $0x8] sm:$0xff] %vm275, %v328
        %338 = vst.msk [vmem:[%s335 + $0x10] sm:$0xff] %vm275, %v329
        %339 = vst.msk [vmem:[%s335 + $0x18] sm:$0xff] %vm275, %v330
        %340 = vst.msk [vmem:[%s335 + $0x20] sm:$0xff] %vm275, %v331
        %341 = vst.msk [vmem:[%s335 + $0x28] sm:$0xff] %vm275, %v332
        %342 = vst.msk [vmem:[%s335 + $0x30] sm:$0xff] %vm275, %v333
        %343 = vst.msk [vmem:[%s335 + $0x38] sm:$0xff] %vm275, %v334
        %v344 = vld [vmem:[#allocation2] sm:$0xff]
        %v345 = vld [vmem:[#allocation2 + $0x8] sm:$0xff]
        %v346 = vld [vmem:[#allocation2 + $0x10] sm:$0xff]
        %v347 = vld [vmem:[#allocation2 + $0x18] sm:$0xff]
        %v348 = vld [vmem:[#allocation2 + $0x20] sm:$0xff]
        %v349 = vld [vmem:[#allocation2 + $0x28] sm:$0xff]
        %v350 = vld [vmem:[#allocation2 + $0x30] sm:$0xff]
        %v351 = vld [vmem:[#allocation2 + $0x38] sm:$0xff]
        %v352 = vld [vmem:[#allocation2 + $0x40] sm:$0xff]
        %v353 = vld [vmem:[#allocation2 + $0x48] sm:$0xff]
        %v354 = vld [vmem:[#allocation2 + $0x50] sm:$0xff]
        %v355 = vld [vmem:[#allocation2 + $0x58] sm:$0xff]
        %v356 = vld [vmem:[#allocation2 + $0x60] sm:$0xff]
        %v357 = vld [vmem:[#allocation2 + $0x68] sm:$0xff]
        %v358 = vld [vmem:[#allocation2 + $0x70] sm:$0xff]
        %v359 = vld [vmem:[#allocation2 + $0x78] sm:$0xff]
        %v360 = vld [vmem:[#allocation2 + $0x80] sm:$0xff]
        %v361 = vld [vmem:[#allocation2 + $0x88] sm:$0xff]
        %v362 = vld [vmem:[#allocation2 + $0x90] sm:$0xff]
        %v363 = vld [vmem:[#allocation2 + $0x98] sm:$0xff]
        %v364 = vld [vmem:[#allocation2 + $0xa0] sm:$0xff]
        %v365 = vld [vmem:[#allocation2 + $0xa8] sm:$0xff]
        %v366 = vld [vmem:[#allocation2 + $0xb0] sm:$0xff]
        %v367 = vld [vmem:[#allocation2 + $0xb8] sm:$0xff]
        %v368 = vld [vmem:[#allocation2 + $0xc0] sm:$0xff]
        %v369 = vld [vmem:[#allocation2 + $0xc8] sm:$0xff]
        %v370 = vld [vmem:[#allocation2 + $0xd0] sm:$0xff]
        %v371 = vld [vmem:[#allocation2 + $0xd8] sm:$0xff]
        %v372 = vld [vmem:[#allocation2 + $0xe0] sm:$0xff]
        %v373 = vld [vmem:[#allocation2 + $0xe8] sm:$0xff]
        %v374 = vld [vmem:[#allocation2 + $0xf0] sm:$0xff]
        %v375 = vld [vmem:[#allocation2 + $0xf8] sm:$0xff]
        %v376 = vld [vmem:[#allocation2 + $0x100] sm:$0xff]
        %v377 = vld [vmem:[#allocation2 + $0x108] sm:$0xff]
        %v378 = vld [vmem:[#allocation2 + $0x110] sm:$0xff]
        %v379 = vld [vmem:[#allocation2 + $0x118] sm:$0xff]
        %v380 = vld [vmem:[#allocation2 + $0x120] sm:$0xff]
        %v381 = vld [vmem:[#allocation2 + $0x128] sm:$0xff]
        %v382 = vld [vmem:[#allocation2 + $0x130] sm:$0xff]
        %v383 = vld [vmem:[#allocation2 + $0x138] sm:$0xff]
        %v384 = vld [vmem:[%s1] sm:$0xff]
        %v385 = vld [vmem:[%s1 + $0x8] sm:$0xff]
        %v387 = vsel %vm275, %v344, 0
        %v390 = vsel %vm275, %v345, 0
        %v393 = vsel %vm275, %v346, 0
        %v396 = vsel %vm275, %v347, 0
        %v399 = vsel %vm275, %v348, 0
        %v402 = vsel %vm275, %v349, 0
        %v405 = vsel %vm275, %v350, 0
        %v408 = vsel %vm275, %v351, 0
        %v411 = vsel %vm275, %v352, 0
        %v414 = vsel %vm275, %v353, 0
        %v417 = vsel %vm275, %v354, 0
        %v420 = vsel %vm275, %v355, 0
        %v423 = vsel %vm275, %v356, 0
        %v426 = vsel %vm275, %v357, 0
        %v429 = vsel %vm275, %v358, 0
        %v432 = vsel %vm275, %v359, 0
        %v435 = vsel %vm275, %v360, 0
        %v438 = vsel %vm275, %v361, 0
        %v441 = vsel %vm275, %v362, 0
        %v444 = vsel %vm275, %v363, 0
        %v447 = vsel %vm275, %v364, 0
        %v450 = vsel %vm275, %v365, 0
        %v453 = vsel %vm275, %v366, 0
        %v456 = vsel %vm275, %v367, 0
        %v459 = vsel %vm275, %v368, 0
        %v462 = vsel %vm275, %v369, 0
        %v465 = vsel %vm275, %v370, 0
        %v468 = vsel %vm275, %v371, 0
        %v471 = vsel %vm275, %v372, 0
        %v474 = vsel %vm275, %v373, 0
        %v477 = vsel %vm275, %v374, 0
        %v480 = vsel %vm275, %v375, 0
        %v483 = vsel %vm275, %v376, 0
        %v486 = vsel %vm275, %v377, 0
        %v489 = vsel %vm275, %v378, 0
        %v492 = vsel %vm275, %v379, 0
        %v495 = vsel %vm275, %v380, 0
        %v498 = vsel %vm275, %v381, 0
        %v501 = vsel %vm275, %v382, 0
        %v504 = vsel %vm275, %v383, 0
        %506 = vmatprep.subr.mxu0 0.0
        %507 = vmatpush1.msra.mxu0 0.0
        %508 = vmatprep.subr.mxu0 0.0
        %509 = vmatpush1.msra.mxu0 0.0
        %510 = vmatprep.subr.mxu0 0.0
        %511 = vmatpush1.msra.mxu0 0.0
        %512 = vmatprep.subr.mxu0 0.0
        %513 = vmatpush1.msra.mxu0 0.0
        %514 = vmatprep.subr.mxu0 0.0
        %515 = vmatpush1.msra.mxu0 0.0
        %516 = vmatprep.subr.mxu0 0.0
        %517 = vmatpush1.msra.mxu0 0.0
        %518 = vmatprep.subr.mxu0 0.0
        %519 = vmatpush1.msra.mxu0 0.0
        %520 = vmatprep.subr.mxu0 0.0
        %521 = vmatpush1.msra.mxu0 0.0
        %522 = vmatprep.subr.mxu0 0.0
        %523 = vmatpush1.msra.mxu0 0.0
        %524 = vmatprep.subr.mxu0 0.0
        %525 = vmatpush1.msra.mxu0 0.0
        %526 = vmatprep.subr.mxu0 0.0
        %527 = vmatpush1.msra.mxu0 0.0
        %528 = vmatprep.subr.mxu0 0.0
        %529 = vmatpush1.msra.mxu0 0.0
        %530 = vmatprep.subr.mxu0 0.0
        %531 = vmatpush1.msra.mxu0 0.0
        %532 = vmatprep.subr.mxu0 0.0
        %533 = vmatpush1.msra.mxu0 0.0
        %534 = vmatprep.subr.mxu0 0.0
        %535 = vmatpush1.msra.mxu0 %v385
        %536 = vmatprep.subr.mxu0 0.0
        %537 = vmatpush1.msra.mxu0 %v384
        %538 = vmatprep.subr.mxu0 0.0
        %539 = vmatpush2.msra.mxu0 0.0
        %540 = vmatprep.subr.mxu0 0.0
        %541 = vmatpush2.msra.mxu0 0.0
        %542 = vmatprep.subr.mxu0 0.0
        %543 = vmatpush2.msra.mxu0 0.0
        %544 = vmatprep.subr.mxu0 0.0
        %545 = vmatpush2.msra.mxu0 0.0
        %546 = vmatprep.subr.mxu0 0.0
        %547 = vmatpush2.msra.mxu0 0.0
        %548 = vmatprep.subr.mxu0 0.0
        %549 = vmatpush2.msra.mxu0 0.0
        %550 = vmatprep.subr.mxu0 0.0
        %551 = vmatpush2.msra.mxu0 0.0
        %552 = vmatprep.subr.mxu0 0.0
        %553 = vmatpush2.msra.mxu0 0.0
        %554 = vmatprep.subr.mxu0 0.0
        %555 = vmatpush2.msra.mxu0 0.0
        %556 = vmatprep.subr.mxu0 0.0
        %557 = vmatpush2.msra.mxu0 0.0
        %558 = vmatprep.subr.mxu0 0.0
        %559 = vmatpush2.msra.mxu0 0.0
        %560 = vmatprep.subr.mxu0 0.0
        %561 = vmatpush2.msra.mxu0 0.0
        %562 = vmatprep.subr.mxu0 0.0
        %563 = vmatpush2.msra.mxu0 0.0
        %564 = vmatprep.subr.mxu0 0.0
        %565 = vmatpush2.msra.mxu0 0.0
        %566 = vmatprep.subr.mxu0 0.0
        %567 = vmatpush2.msra.mxu0 0.0
        %568 = vmatprep.subr.mxu0 0.0
        %569 = vmatpush2.msra.mxu0 0.0
        %570 = vmatprep.mubr.f32.mxu0 0.0
        %571 = vmatmul.mubr.f32.gmra.mxu0 %v387
        %v572 = vpop.f32.mrf.mxu0
        %v573 = vadd.f32 0.0, %v572
        %v574 = vpop.f32.mrf.mxu0
        %575 = vmatprep.mubr.f32.mxu0 0.0
        %576 = vmatmul.mubr.f32.gmra.mxu0 %v390
        %v577 = vpop.f32.mrf.mxu0
        %v578 = vadd.f32 0.0, %v577
        %v579 = vpop.f32.mrf.mxu0
        %580 = vmatprep.mubr.f32.mxu0 0.0
        %581 = vmatmul.mubr.f32.gmra.mxu0 %v393
        %v582 = vpop.f32.mrf.mxu0
        %v583 = vadd.f32 0.0, %v582
        %v584 = vpop.f32.mrf.mxu0
        %585 = vmatprep.mubr.f32.mxu0 0.0
        %586 = vmatmul.mubr.f32.gmra.mxu0 %v396
        %v587 = vpop.f32.mrf.mxu0
        %v588 = vadd.f32 0.0, %v587
        %v589 = vpop.f32.mrf.mxu0
        %590 = vmatprep.mubr.f32.mxu0 0.0
        %591 = vmatmul.mubr.f32.gmra.mxu0 %v399
        %v592 = vpop.f32.mrf.mxu0
        %v593 = vadd.f32 0.0, %v592
        %v594 = vpop.f32.mrf.mxu0
        %595 = vmatprep.mubr.f32.mxu0 0.0
        %596 = vmatmul.mubr.f32.gmra.mxu0 %v402
        %v597 = vpop.f32.mrf.mxu0
        %v598 = vadd.f32 0.0, %v597
        %v599 = vpop.f32.mrf.mxu0
        %600 = vmatprep.mubr.f32.mxu0 0.0
        %601 = vmatmul.mubr.f32.gmra.mxu0 %v405
        %v602 = vpop.f32.mrf.mxu0
        %v603 = vadd.f32 0.0, %v602
        %v604 = vpop.f32.mrf.mxu0
        %605 = vmatprep.mubr.f32.mxu0 0.0
        %606 = vmatmul.mubr.f32.gmra.mxu0 %v408
        %v607 = vpop.f32.mrf.mxu0
        %v608 = vadd.f32 0.0, %v607
        %v609 = vpop.f32.mrf.mxu0
        %610 = vmatprep.mubr.f32.mxu0 0.0
        %611 = vmatmul.mubr.f32.gmra.mxu0 %v411
        %v612 = vpop.f32.mrf.mxu0
        %v613 = vadd.f32 0.0, %v612
        %v614 = vpop.f32.mrf.mxu0
        %615 = vmatprep.mubr.f32.mxu0 0.0
        %616 = vmatmul.mubr.f32.gmra.mxu0 %v414
        %v617 = vpop.f32.mrf.mxu0
        %v618 = vadd.f32 0.0, %v617
        %v619 = vpop.f32.mrf.mxu0
        %620 = vmatprep.mubr.f32.mxu0 0.0
        %621 = vmatmul.mubr.f32.gmra.mxu0 %v417
        %v622 = vpop.f32.mrf.mxu0
        %v623 = vadd.f32 0.0, %v622
        %v624 = vpop.f32.mrf.mxu0
        %625 = vmatprep.mubr.f32.mxu0 0.0
        %626 = vmatmul.mubr.f32.gmra.mxu0 %v420
        %v627 = vpop.f32.mrf.mxu0
        %v628 = vadd.f32 0.0, %v627
        %v629 = vpop.f32.mrf.mxu0
        %630 = vmatprep.mubr.f32.mxu0 0.0
        %631 = vmatmul.mubr.f32.gmra.mxu0 %v423
        %v632 = vpop.f32.mrf.mxu0
        %v633 = vadd.f32 0.0, %v632
        %v634 = vpop.f32.mrf.mxu0
        %635 = vmatprep.mubr.f32.mxu0 0.0
        %636 = vmatmul.mubr.f32.gmra.mxu0 %v426
        %v637 = vpop.f32.mrf.mxu0
        %v638 = vadd.f32 0.0, %v637
        %v639 = vpop.f32.mrf.mxu0
        %640 = vmatprep.mubr.f32.mxu0 0.0
        %641 = vmatmul.mubr.f32.gmra.mxu0 %v429
        %v642 = vpop.f32.mrf.mxu0
        %v643 = vadd.f32 0.0, %v642
        %v644 = vpop.f32.mrf.mxu0
        %645 = vmatprep.mubr.f32.mxu0 0.0
        %646 = vmatmul.mubr.f32.gmra.mxu0 %v432
        %v647 = vpop.f32.mrf.mxu0
        %v648 = vadd.f32 0.0, %v647
        %v649 = vpop.f32.mrf.mxu0
        %650 = vmatprep.mubr.f32.mxu0 0.0
        %651 = vmatmul.mubr.f32.gmra.mxu0 %v435
        %v652 = vpop.f32.mrf.mxu0
        %v653 = vadd.f32 0.0, %v652
        %v654 = vpop.f32.mrf.mxu0
        %655 = vmatprep.mubr.f32.mxu0 0.0
        %656 = vmatmul.mubr.f32.gmra.mxu0 %v438
        %v657 = vpop.f32.mrf.mxu0
        %v658 = vadd.f32 0.0, %v657
        %v659 = vpop.f32.mrf.mxu0
        %660 = vmatprep.mubr.f32.mxu0 0.0
        %661 = vmatmul.mubr.f32.gmra.mxu0 %v441
        %v662 = vpop.f32.mrf.mxu0
        %v663 = vadd.f32 0.0, %v662
        %v664 = vpop.f32.mrf.mxu0
        %665 = vmatprep.mubr.f32.mxu0 0.0
        %666 = vmatmul.mubr.f32.gmra.mxu0 %v444
        %v667 = vpop.f32.mrf.mxu0
        %v668 = vadd.f32 0.0, %v667
        %v669 = vpop.f32.mrf.mxu0
        %670 = vmatprep.mubr.f32.mxu0 0.0
        %671 = vmatmul.mubr.f32.gmra.mxu0 %v447
        %v672 = vpop.f32.mrf.mxu0
        %v673 = vadd.f32 0.0, %v672
        %v674 = vpop.f32.mrf.mxu0
        %675 = vmatprep.mubr.f32.mxu0 0.0
        %676 = vmatmul.mubr.f32.gmra.mxu0 %v450
        %v677 = vpop.f32.mrf.mxu0
        %v678 = vadd.f32 0.0, %v677
        %v679 = vpop.f32.mrf.mxu0
        %680 = vmatprep.mubr.f32.mxu0 0.0
        %681 = vmatmul.mubr.f32.gmra.mxu0 %v453
        %v682 = vpop.f32.mrf.mxu0
        %v683 = vadd.f32 0.0, %v682
        %v684 = vpop.f32.mrf.mxu0
        %685 = vmatprep.mubr.f32.mxu0 0.0
        %686 = vmatmul.mubr.f32.gmra.mxu0 %v456
        %v687 = vpop.f32.mrf.mxu0
        %v688 = vadd.f32 0.0, %v687
        %v689 = vpop.f32.mrf.mxu0
        %690 = vmatprep.mubr.f32.mxu0 0.0
        %691 = vmatmul.mubr.f32.gmra.mxu0 %v459
        %v692 = vpop.f32.mrf.mxu0
        %v693 = vadd.f32 0.0, %v692
        %v694 = vpop.f32.mrf.mxu0
        %695 = vmatprep.mubr.f32.mxu0 0.0
        %696 = vmatmul.mubr.f32.gmra.mxu0 %v462
        %v697 = vpop.f32.mrf.mxu0
        %v698 = vadd.f32 0.0, %v697
        %v699 = vpop.f32.mrf.mxu0
        %700 = vmatprep.mubr.f32.mxu0 0.0
        %701 = vmatmul.mubr.f32.gmra.mxu0 %v465
        %v702 = vpop.f32.mrf.mxu0
        %v703 = vadd.f32 0.0, %v702
        %v704 = vpop.f32.mrf.mxu0
        %705 = vmatprep.mubr.f32.mxu0 0.0
        %706 = vmatmul.mubr.f32.gmra.mxu0 %v468
        %v707 = vpop.f32.mrf.mxu0
        %v708 = vadd.f32 0.0, %v707
        %v709 = vpop.f32.mrf.mxu0
        %710 = vmatprep.mubr.f32.mxu0 0.0
        %711 = vmatmul.mubr.f32.gmra.mxu0 %v471
        %v712 = vpop.f32.mrf.mxu0
        %v713 = vadd.f32 0.0, %v712
        %v714 = vpop.f32.mrf.mxu0
        %715 = vmatprep.mubr.f32.mxu0 0.0
        %716 = vmatmul.mubr.f32.gmra.mxu0 %v474
        %v717 = vpop.f32.mrf.mxu0
        %v718 = vadd.f32 0.0, %v717
        %v719 = vpop.f32.mrf.mxu0
        %720 = vmatprep.mubr.f32.mxu0 0.0
        %721 = vmatmul.mubr.f32.gmra.mxu0 %v477
        %v722 = vpop.f32.mrf.mxu0
        %v723 = vadd.f32 0.0, %v722
        %v724 = vpop.f32.mrf.mxu0
        %725 = vmatprep.mubr.f32.mxu0 0.0
        %726 = vmatmul.mubr.f32.gmra.mxu0 %v480
        %v727 = vpop.f32.mrf.mxu0
        %v728 = vadd.f32 0.0, %v727
        %v729 = vpop.f32.mrf.mxu0
        %730 = vmatprep.mubr.f32.mxu0 0.0
        %731 = vmatmul.mubr.f32.gmra.mxu0 %v483
        %v732 = vpop.f32.mrf.mxu0
        %v733 = vadd.f32 0.0, %v732
        %v734 = vpop.f32.mrf.mxu0
        %735 = vmatprep.mubr.f32.mxu0 0.0
        %736 = vmatmul.mubr.f32.gmra.mxu0 %v486
        %v737 = vpop.f32.mrf.mxu0
        %v738 = vadd.f32 0.0, %v737
        %v739 = vpop.f32.mrf.mxu0
        %740 = vmatprep.mubr.f32.mxu0 0.0
        %741 = vmatmul.mubr.f32.gmra.mxu0 %v489
        %v742 = vpop.f32.mrf.mxu0
        %v743 = vadd.f32 0.0, %v742
        %v744 = vpop.f32.mrf.mxu0
        %745 = vmatprep.mubr.f32.mxu0 0.0
        %746 = vmatmul.mubr.f32.gmra.mxu0 %v492
        %v747 = vpop.f32.mrf.mxu0
        %v748 = vadd.f32 0.0, %v747
        %v749 = vpop.f32.mrf.mxu0
        %750 = vmatprep.mubr.f32.mxu0 0.0
        %751 = vmatmul.mubr.f32.gmra.mxu0 %v495
        %v752 = vpop.f32.mrf.mxu0
        %v753 = vadd.f32 0.0, %v752
        %v754 = vpop.f32.mrf.mxu0
        %755 = vmatprep.mubr.f32.mxu0 0.0
        %756 = vmatmul.mubr.f32.gmra.mxu0 %v498
        %v757 = vpop.f32.mrf.mxu0
        %v758 = vadd.f32 0.0, %v757
        %v759 = vpop.f32.mrf.mxu0
        %760 = vmatprep.mubr.f32.mxu0 0.0
        %761 = vmatmul.mubr.f32.gmra.mxu0 %v501
        %v762 = vpop.f32.mrf.mxu0
        %v763 = vadd.f32 0.0, %v762
        %v764 = vpop.f32.mrf.mxu0
        %765 = vmatprep.mubr.f32.mxu0 0.0
        %766 = vmatmul.mubr.f32.gmra.mxu0 %v504
        %v767 = vpop.f32.mrf.mxu0
        %v768 = vadd.f32 0.0, %v767
        %v769 = vpop.f32.mrf.mxu0
        %770 = vdwg.mxu0
        %v771 = vld [vmem:[%s0] sm:$0x3f]
        %v773 = vsel %vm275, %v771, 0
        %775 = vmatprep.subr.mxu0 0.0
        %776 = vmatpush1.msra.mxu0 0.0
        %777 = vmatprep.subr.mxu0 0.0
        %778 = vmatpush1.msra.mxu0 0.0
        %779 = vmatprep.subr.mxu0 0.0
        %780 = vmatpush1.msra.mxu0 0.0
        %781 = vmatprep.subr.mxu0 0.0
        %782 = vmatpush1.msra.mxu0 0.0
        %783 = vmatprep.subr.mxu0 0.0
        %784 = vmatpush1.msra.mxu0 0.0
        %785 = vmatprep.subr.mxu0 0.0
        %786 = vmatpush1.msra.mxu0 0.0
        %787 = vmatprep.subr.mxu0 0.0
        %788 = vmatpush1.msra.mxu0 0.0
        %789 = vmatprep.subr.mxu0 0.0
        %790 = vmatpush1.msra.mxu0 0.0
        %791 = vmatprep.subr.mxu0 0.0
        %792 = vmatpush1.msra.mxu0 0.0
        %793 = vmatprep.subr.mxu0 0.0
        %794 = vmatpush1.msra.mxu0 0.0
        %795 = vmatprep.subr.mxu0 0.0
        %796 = vmatpush1.msra.mxu0 0.0
        %797 = vmatprep.subr.mxu0 0.0
        %798 = vmatpush1.msra.mxu0 0.0
        %799 = vmatprep.subr.mxu0 0.0
        %800 = vmatpush1.msra.mxu0 0.0
        %801 = vmatprep.subr.mxu0 0.0
        %802 = vmatpush1.msra.mxu0 0.0
        %803 = vmatprep.subr.mxu0 0.0
        %804 = vmatpush1.msra.mxu0 %v578
        %805 = vmatprep.subr.mxu0 0.0
        %806 = vmatpush1.msra.mxu0 %v573
        %807 = vmatprep.subr.mxu0 0.0
        %808 = vmatpush2.msra.mxu0 0.0
        %809 = vmatprep.subr.mxu0 0.0
        %810 = vmatpush2.msra.mxu0 0.0
        %811 = vmatprep.subr.mxu0 0.0
        %812 = vmatpush2.msra.mxu0 0.0
        %813 = vmatprep.subr.mxu0 0.0
        %814 = vmatpush2.msra.mxu0 0.0
        %815 = vmatprep.subr.mxu0 0.0
        %816 = vmatpush2.msra.mxu0 0.0
        %817 = vmatprep.subr.mxu0 0.0
        %818 = vmatpush2.msra.mxu0 0.0
        %819 = vmatprep.subr.mxu0 0.0
        %820 = vmatpush2.msra.mxu0 0.0
        %821 = vmatprep.subr.mxu0 0.0
        %822 = vmatpush2.msra.mxu0 0.0
        %823 = vmatprep.subr.mxu0 0.0
        %824 = vmatpush2.msra.mxu0 0.0
        %825 = vmatprep.subr.mxu0 0.0
        %826 = vmatpush2.msra.mxu0 0.0
        %827 = vmatprep.subr.mxu0 0.0
        %828 = vmatpush2.msra.mxu0 0.0
        %829 = vmatprep.subr.mxu0 0.0
        %830 = vmatpush2.msra.mxu0 0.0
        %831 = vmatprep.subr.mxu0 0.0
        %832 = vmatpush2.msra.mxu0 0.0
        %833 = vmatprep.subr.mxu0 0.0
        %834 = vmatpush2.msra.mxu0 0.0
        %835 = vmatprep.subr.mxu0 0.0
        %836 = vmatpush2.msra.mxu0 0.0
        %837 = vmatprep.subr.mxu0 0.0
        %838 = vmatpush2.msra.mxu0 0.0
        %839 = vmatprep.mubr.f32.mxu0 0.0
        %840 = vmatmul.mubr.f32.gmra.mxu0 %v773
        %v841 = vpop.f32.mrf.mxu0
        %v842 = vadd.f32 0.0, %v841
        %v843 = vpop.f32.mrf.mxu0
        %844 = vdwg.mxu0
        %845 = vmatprep.subr.mxu0 0.0
        %846 = vmatpush1.msra.mxu0 0.0
        %847 = vmatprep.subr.mxu0 0.0
        %848 = vmatpush1.msra.mxu0 0.0
        %849 = vmatprep.subr.mxu0 0.0
        %850 = vmatpush1.msra.mxu0 0.0
        %851 = vmatprep.subr.mxu0 0.0
        %852 = vmatpush1.msra.mxu0 0.0
        %853 = vmatprep.subr.mxu0 0.0
        %854 = vmatpush1.msra.mxu0 0.0
        %855 = vmatprep.subr.mxu0 0.0
        %856 = vmatpush1.msra.mxu0 0.0
        %857 = vmatprep.subr.mxu0 0.0
        %858 = vmatpush1.msra.mxu0 0.0
        %859 = vmatprep.subr.mxu0 0.0
        %860 = vmatpush1.msra.mxu0 0.0
        %861 = vmatprep.subr.mxu0 0.0
        %862 = vmatpush1.msra.mxu0 0.0
        %863 = vmatprep.subr.mxu0 0.0
        %864 = vmatpush1.msra.mxu0 0.0
        %865 = vmatprep.subr.mxu0 0.0
        %866 = vmatpush1.msra.mxu0 0.0
        %867 = vmatprep.subr.mxu0 0.0
        %868 = vmatpush1.msra.mxu0 0.0
        %869 = vmatprep.subr.mxu0 0.0
        %870 = vmatpush1.msra.mxu0 0.0
        %871 = vmatprep.subr.mxu0 0.0
        %872 = vmatpush1.msra.mxu0 0.0
        %873 = vmatprep.subr.mxu0 0.0
        %874 = vmatpush1.msra.mxu0 %v588
        %875 = vmatprep.subr.mxu0 0.0
        %876 = vmatpush1.msra.mxu0 %v583
        %877 = vmatprep.subr.mxu0 0.0
        %878 = vmatpush2.msra.mxu0 0.0
        %879 = vmatprep.subr.mxu0 0.0
        %880 = vmatpush2.msra.mxu0 0.0
        %881 = vmatprep.subr.mxu0 0.0
        %882 = vmatpush2.msra.mxu0 0.0
        %883 = vmatprep.subr.mxu0 0.0
        %884 = vmatpush2.msra.mxu0 0.0
        %885 = vmatprep.subr.mxu0 0.0
        %886 = vmatpush2.msra.mxu0 0.0
        %887 = vmatprep.subr.mxu0 0.0
        %888 = vmatpush2.msra.mxu0 0.0
        %889 = vmatprep.subr.mxu0 0.0
        %890 = vmatpush2.msra.mxu0 0.0
        %891 = vmatprep.subr.mxu0 0.0
        %892 = vmatpush2.msra.mxu0 0.0
        %893 = vmatprep.subr.mxu0 0.0
        %894 = vmatpush2.msra.mxu0 0.0
        %895 = vmatprep.subr.mxu0 0.0
        %896 = vmatpush2.msra.mxu0 0.0
        %897 = vmatprep.subr.mxu0 0.0
        %898 = vmatpush2.msra.mxu0 0.0
        %899 = vmatprep.subr.mxu0 0.0
        %900 = vmatpush2.msra.mxu0 0.0
        %901 = vmatprep.subr.mxu0 0.0
        %902 = vmatpush2.msra.mxu0 0.0
        %903 = vmatprep.subr.mxu0 0.0
        %904 = vmatpush2.msra.mxu0 0.0
        %905 = vmatprep.subr.mxu0 0.0
        %906 = vmatpush2.msra.mxu0 0.0
        %907 = vmatprep.subr.mxu0 0.0
        %908 = vmatpush2.msra.mxu0 0.0
        %909 = vmatprep.mubr.f32.mxu0 0.0
        %910 = vmatmul.mubr.f32.gmra.mxu0 %v773
        %v911 = vpop.f32.mrf.mxu0
        %v912 = vadd.f32 0.0, %v911
        %v913 = vpop.f32.mrf.mxu0
        %914 = vdwg.mxu0
        %915 = vmatprep.subr.mxu0 0.0
        %916 = vmatpush1.msra.mxu0 0.0
        %917 = vmatprep.subr.mxu0 0.0
        %918 = vmatpush1.msra.mxu0 0.0
        %919 = vmatprep.subr.mxu0 0.0
        %920 = vmatpush1.msra.mxu0 0.0
        %921 = vmatprep.subr.mxu0 0.0
        %922 = vmatpush1.msra.mxu0 0.0
        %923 = vmatprep.subr.mxu0 0.0
        %924 = vmatpush1.msra.mxu0 0.0
        %925 = vmatprep.subr.mxu0 0.0
        %926 = vmatpush1.msra.mxu0 0.0
        %927 = vmatprep.subr.mxu0 0.0
        %928 = vmatpush1.msra.mxu0 0.0
        %929 = vmatprep.subr.mxu0 0.0
        %930 = vmatpush1.msra.mxu0 0.0
        %931 = vmatprep.subr.mxu0 0.0
        %932 = vmatpush1.msra.mxu0 0.0
        %933 = vmatprep.subr.mxu0 0.0
        %934 = vmatpush1.msra.mxu0 0.0
        %935 = vmatprep.subr.mxu0 0.0
        %936 = vmatpush1.msra.mxu0 0.0
        %937 = vmatprep.subr.mxu0 0.0
        %938 = vmatpush1.msra.mxu0 0.0
        %939 = vmatprep.subr.mxu0 0.0
        %940 = vmatpush1.msra.mxu0 0.0
        %941 = vmatprep.subr.mxu0 0.0
        %942 = vmatpush1.msra.mxu0 0.0
        %943 = vmatprep.subr.mxu0 0.0
        %944 = vmatpush1.msra.mxu0 %v598
        %945 = vmatprep.subr.mxu0 0.0
        %946 = vmatpush1.msra.mxu0 %v593
        %947 = vmatprep.subr.mxu0 0.0
        %948 = vmatpush2.msra.mxu0 0.0
        %949 = vmatprep.subr.mxu0 0.0
        %950 = vmatpush2.msra.mxu0 0.0
        %951 = vmatprep.subr.mxu0 0.0
        %952 = vmatpush2.msra.mxu0 0.0
        %953 = vmatprep.subr.mxu0 0.0
        %954 = vmatpush2.msra.mxu0 0.0
        %955 = vmatprep.subr.mxu0 0.0
        %956 = vmatpush2.msra.mxu0 0.0
        %957 = vmatprep.subr.mxu0 0.0
        %958 = vmatpush2.msra.mxu0 0.0
        %959 = vmatprep.subr.mxu0 0.0
        %960 = vmatpush2.msra.mxu0 0.0
        %961 = vmatprep.subr.mxu0 0.0
        %962 = vmatpush2.msra.mxu0 0.0
        %963 = vmatprep.subr.mxu0 0.0
        %964 = vmatpush2.msra.mxu0 0.0
        %965 = vmatprep.subr.mxu0 0.0
        %966 = vmatpush2.msra.mxu0 0.0
        %967 = vmatprep.subr.mxu0 0.0
        %968 = vmatpush2.msra.mxu0 0.0
        %969 = vmatprep.subr.mxu0 0.0
        %970 = vmatpush2.msra.mxu0 0.0
        %971 = vmatprep.subr.mxu0 0.0
        %972 = vmatpush2.msra.mxu0 0.0
        %973 = vmatprep.subr.mxu0 0.0
        %974 = vmatpush2.msra.mxu0 0.0
        %975 = vmatprep.subr.mxu0 0.0
        %976 = vmatpush2.msra.mxu0 0.0
        %977 = vmatprep.subr.mxu0 0.0
        %978 = vmatpush2.msra.mxu0 0.0
        %979 = vmatprep.mubr.f32.mxu0 0.0
        %980 = vmatmul.mubr.f32.gmra.mxu0 %v773
        %v981 = vpop.f32.mrf.mxu0
        %v982 = vadd.f32 0.0, %v981
        %v983 = vpop.f32.mrf.mxu0
        %984 = vdwg.mxu0
        %985 = vmatprep.subr.mxu0 0.0
        %986 = vmatpush1.msra.mxu0 0.0
        %987 = vmatprep.subr.mxu0 0.0
        %988 = vmatpush1.msra.mxu0 0.0
        %989 = vmatprep.subr.mxu0 0.0
        %990 = vmatpush1.msra.mxu0 0.0
        %991 = vmatprep.subr.mxu0 0.0
        %992 = vmatpush1.msra.mxu0 0.0
        %993 = vmatprep.subr.mxu0 0.0
        %994 = vmatpush1.msra.mxu0 0.0
        %995 = vmatprep.subr.mxu0 0.0
        %996 = vmatpush1.msra.mxu0 0.0
        %997 = vmatprep.subr.mxu0 0.0
        %998 = vmatpush1.msra.mxu0 0.0
        %999 = vmatprep.subr.mxu0 0.0
        %1000 = vmatpush1.msra.mxu0 0.0
        %1001 = vmatprep.subr.mxu0 0.0
        %1002 = vmatpush1.msra.mxu0 0.0
        %1003 = vmatprep.subr.mxu0 0.0
        %1004 = vmatpush1.msra.mxu0 0.0
        %1005 = vmatprep.subr.mxu0 0.0
        %1006 = vmatpush1.msra.mxu0 0.0
        %1007 = vmatprep.subr.mxu0 0.0
        %1008 = vmatpush1.msra.mxu0 0.0
        %1009 = vmatprep.subr.mxu0 0.0
        %1010 = vmatpush1.msra.mxu0 0.0
        %1011 = vmatprep.subr.mxu0 0.0
        %1012 = vmatpush1.msra.mxu0 0.0
        %1013 = vmatprep.subr.mxu0 0.0
        %1014 = vmatpush1.msra.mxu0 %v608
        %1015 = vmatprep.subr.mxu0 0.0
        %1016 = vmatpush1.msra.mxu0 %v603
        %1017 = vmatprep.subr.mxu0 0.0
        %1018 = vmatpush2.msra.mxu0 0.0
        %1019 = vmatprep.subr.mxu0 0.0
        %1020 = vmatpush2.msra.mxu0 0.0
        %1021 = vmatprep.subr.mxu0 0.0
        %1022 = vmatpush2.msra.mxu0 0.0
        %1023 = vmatprep.subr.mxu0 0.0
        %1024 = vmatpush2.msra.mxu0 0.0
        %1025 = vmatprep.subr.mxu0 0.0
        %1026 = vmatpush2.msra.mxu0 0.0
        %1027 = vmatprep.subr.mxu0 0.0
        %1028 = vmatpush2.msra.mxu0 0.0
        %1029 = vmatprep.subr.mxu0 0.0
        %1030 = vmatpush2.msra.mxu0 0.0
        %1031 = vmatprep.subr.mxu0 0.0
        %1032 = vmatpush2.msra.mxu0 0.0
        %1033 = vmatprep.subr.mxu0 0.0
        %1034 = vmatpush2.msra.mxu0 0.0
        %1035 = vmatprep.subr.mxu0 0.0
        %1036 = vmatpush2.msra.mxu0 0.0
        %1037 = vmatprep.subr.mxu0 0.0
        %1038 = vmatpush2.msra.mxu0 0.0
        %1039 = vmatprep.subr.mxu0 0.0
        %1040 = vmatpush2.msra.mxu0 0.0
        %1041 = vmatprep.subr.mxu0 0.0
        %1042 = vmatpush2.msra.mxu0 0.0
        %1043 = vmatprep.subr.mxu0 0.0
        %1044 = vmatpush2.msra.mxu0 0.0
        %1045 = vmatprep.subr.mxu0 0.0
        %1046 = vmatpush2.msra.mxu0 0.0
        %1047 = vmatprep.subr.mxu0 0.0
        %1048 = vmatpush2.msra.mxu0 0.0
        %1049 = vmatprep.mubr.f32.mxu0 0.0
        %1050 = vmatmul.mubr.f32.gmra.mxu0 %v773
        %v1051 = vpop.f32.mrf.mxu0
        %v1052 = vadd.f32 0.0, %v1051
        %v1053 = vpop.f32.mrf.mxu0
        %1054 = vdwg.mxu0
        %1055 = vmatprep.subr.mxu0 0.0
        %1056 = vmatpush1.msra.mxu0 0.0
        %1057 = vmatprep.subr.mxu0 0.0
        %1058 = vmatpush1.msra.mxu0 0.0
        %1059 = vmatprep.subr.mxu0 0.0
        %1060 = vmatpush1.msra.mxu0 0.0
        %1061 = vmatprep.subr.mxu0 0.0
        %1062 = vmatpush1.msra.mxu0 0.0
        %1063 = vmatprep.subr.mxu0 0.0
        %1064 = vmatpush1.msra.mxu0 0.0
        %1065 = vmatprep.subr.mxu0 0.0
        %1066 = vmatpush1.msra.mxu0 0.0
        %1067 = vmatprep.subr.mxu0 0.0
        %1068 = vmatpush1.msra.mxu0 0.0
        %1069 = vmatprep.subr.mxu0 0.0
        %1070 = vmatpush1.msra.mxu0 0.0
        %1071 = vmatprep.subr.mxu0 0.0
        %1072 = vmatpush1.msra.mxu0 0.0
        %1073 = vmatprep.subr.mxu0 0.0
        %1074 = vmatpush1.msra.mxu0 0.0
        %1075 = vmatprep.subr.mxu0 0.0
        %1076 = vmatpush1.msra.mxu0 0.0
        %1077 = vmatprep.subr.mxu0 0.0
        %1078 = vmatpush1.msra.mxu0 0.0
        %1079 = vmatprep.subr.mxu0 0.0
        %1080 = vmatpush1.msra.mxu0 0.0
        %1081 = vmatprep.subr.mxu0 0.0
        %1082 = vmatpush1.msra.mxu0 0.0
        %1083 = vmatprep.subr.mxu0 0.0
        %1084 = vmatpush1.msra.mxu0 %v618
        %1085 = vmatprep.subr.mxu0 0.0
        %1086 = vmatpush1.msra.mxu0 %v613
        %1087 = vmatprep.subr.mxu0 0.0
        %1088 = vmatpush2.msra.mxu0 0.0
        %1089 = vmatprep.subr.mxu0 0.0
        %1090 = vmatpush2.msra.mxu0 0.0
        %1091 = vmatprep.subr.mxu0 0.0
        %1092 = vmatpush2.msra.mxu0 0.0
        %1093 = vmatprep.subr.mxu0 0.0
        %1094 = vmatpush2.msra.mxu0 0.0
        %1095 = vmatprep.subr.mxu0 0.0
        %1096 = vmatpush2.msra.mxu0 0.0
        %1097 = vmatprep.subr.mxu0 0.0
        %1098 = vmatpush2.msra.mxu0 0.0
        %1099 = vmatprep.subr.mxu0 0.0
        %1100 = vmatpush2.msra.mxu0 0.0
        %1101 = vmatprep.subr.mxu0 0.0
        %1102 = vmatpush2.msra.mxu0 0.0
        %1103 = vmatprep.subr.mxu0 0.0
        %1104 = vmatpush2.msra.mxu0 0.0
        %1105 = vmatprep.subr.mxu0 0.0
        %1106 = vmatpush2.msra.mxu0 0.0
        %1107 = vmatprep.subr.mxu0 0.0
        %1108 = vmatpush2.msra.mxu0 0.0
        %1109 = vmatprep.subr.mxu0 0.0
        %1110 = vmatpush2.msra.mxu0 0.0
        %1111 = vmatprep.subr.mxu0 0.0
        %1112 = vmatpush2.msra.mxu0 0.0
        %1113 = vmatprep.subr.mxu0 0.0
        %1114 = vmatpush2.msra.mxu0 0.0
        %1115 = vmatprep.subr.mxu0 0.0
        %1116 = vmatpush2.msra.mxu0 0.0
        %1117 = vmatprep.subr.mxu0 0.0
        %1118 = vmatpush2.msra.mxu0 0.0
        %1119 = vmatprep.mubr.f32.mxu0 0.0
        %1120 = vmatmul.mubr.f32.gmra.mxu0 %v773
        %v1121 = vpop.f32.mrf.mxu0
        %v1122 = vadd.f32 0.0, %v1121
        %v1123 = vpop.f32.mrf.mxu0
        %1124 = vdwg.mxu0
        %1125 = vmatprep.subr.mxu0 0.0
        %1126 = vmatpush1.msra.mxu0 0.0
        %1127 = vmatprep.subr.mxu0 0.0
        %1128 = vmatpush1.msra.mxu0 0.0
        %1129 = vmatprep.subr.mxu0 0.0
        %1130 = vmatpush1.msra.mxu0 0.0
        %1131 = vmatprep.subr.mxu0 0.0
        %1132 = vmatpush1.msra.mxu0 0.0
        %1133 = vmatprep.subr.mxu0 0.0
        %1134 = vmatpush1.msra.mxu0 0.0
        %1135 = vmatprep.subr.mxu0 0.0
        %1136 = vmatpush1.msra.mxu0 0.0
        %1137 = vmatprep.subr.mxu0 0.0
        %1138 = vmatpush1.msra.mxu0 0.0
        %1139 = vmatprep.subr.mxu0 0.0
        %1140 = vmatpush1.msra.mxu0 0.0
        %1141 = vmatprep.subr.mxu0 0.0
        %1142 = vmatpush1.msra.mxu0 0.0
        %1143 = vmatprep.subr.mxu0 0.0
        %1144 = vmatpush1.msra.mxu0 0.0
        %1145 = vmatprep.subr.mxu0 0.0
        %1146 = vmatpush1.msra.mxu0 0.0
        %1147 = vmatprep.subr.mxu0 0.0
        %1148 = vmatpush1.msra.mxu0 0.0
        %1149 = vmatprep.subr.mxu0 0.0
        %1150 = vmatpush1.msra.mxu0 0.0
        %1151 = vmatprep.subr.mxu0 0.0
        %1152 = vmatpush1.msra.mxu0 0.0
        %1153 = vmatprep.subr.mxu0 0.0
        %1154 = vmatpush1.msra.mxu0 %v628
        %1155 = vmatprep.subr.mxu0 0.0
        %1156 = vmatpush1.msra.mxu0 %v623
        %1157 = vmatprep.subr.mxu0 0.0
        %1158 = vmatpush2.msra.mxu0 0.0
        %1159 = vmatprep.subr.mxu0 0.0
        %1160 = vmatpush2.msra.mxu0 0.0
        %1161 = vmatprep.subr.mxu0 0.0
        %1162 = vmatpush2.msra.mxu0 0.0
        %1163 = vmatprep.subr.mxu0 0.0
        %1164 = vmatpush2.msra.mxu0 0.0
        %1165 = vmatprep.subr.mxu0 0.0
        %1166 = vmatpush2.msra.mxu0 0.0
        %1167 = vmatprep.subr.mxu0 0.0
        %1168 = vmatpush2.msra.mxu0 0.0
        %1169 = vmatprep.subr.mxu0 0.0
        %1170 = vmatpush2.msra.mxu0 0.0
        %1171 = vmatprep.subr.mxu0 0.0
        %1172 = vmatpush2.msra.mxu0 0.0
        %1173 = vmatprep.subr.mxu0 0.0
        %1174 = vmatpush2.msra.mxu0 0.0
        %1175 = vmatprep.subr.mxu0 0.0
        %1176 = vmatpush2.msra.mxu0 0.0
        %1177 = vmatprep.subr.mxu0 0.0
        %1178 = vmatpush2.msra.mxu0 0.0
        %1179 = vmatprep.subr.mxu0 0.0
        %1180 = vmatpush2.msra.mxu0 0.0
        %1181 = vmatprep.subr.mxu0 0.0
        %1182 = vmatpush2.msra.mxu0 0.0
        %1183 = vmatprep.subr.mxu0 0.0
        %1184 = vmatpush2.msra.mxu0 0.0
        %1185 = vmatprep.subr.mxu0 0.0
        %1186 = vmatpush2.msra.mxu0 0.0
        %1187 = vmatprep.subr.mxu0 0.0
        %1188 = vmatpush2.msra.mxu0 0.0
        %1189 = vmatprep.mubr.f32.mxu0 0.0
        %1190 = vmatmul.mubr.f32.gmra.mxu0 %v773
        %v1191 = vpop.f32.mrf.mxu0
        %v1192 = vadd.f32 0.0, %v1191
        %v1193 = vpop.f32.mrf.mxu0
        %1194 = vdwg.mxu0
        %1195 = vmatprep.subr.mxu0 0.0
        %1196 = vmatpush1.msra.mxu0 0.0
        %1197 = vmatprep.subr.mxu0 0.0
        %1198 = vmatpush1.msra.mxu0 0.0
        %1199 = vmatprep.subr.mxu0 0.0
        %1200 = vmatpush1.msra.mxu0 0.0
        %1201 = vmatprep.subr.mxu0 0.0
        %1202 = vmatpush1.msra.mxu0 0.0
        %1203 = vmatprep.subr.mxu0 0.0
        %1204 = vmatpush1.msra.mxu0 0.0
        %1205 = vmatprep.subr.mxu0 0.0
        %1206 = vmatpush1.msra.mxu0 0.0
        %1207 = vmatprep.subr.mxu0 0.0
        %1208 = vmatpush1.msra.mxu0 0.0
        %1209 = vmatprep.subr.mxu0 0.0
        %1210 = vmatpush1.msra.mxu0 0.0
        %1211 = vmatprep.subr.mxu0 0.0
        %1212 = vmatpush1.msra.mxu0 0.0
        %1213 = vmatprep.subr.mxu0 0.0
        %1214 = vmatpush1.msra.mxu0 0.0
        %1215 = vmatprep.subr.mxu0 0.0
        %1216 = vmatpush1.msra.mxu0 0.0
        %1217 = vmatprep.subr.mxu0 0.0
        %1218 = vmatpush1.msra.mxu0 0.0
        %1219 = vmatprep.subr.mxu0 0.0
        %1220 = vmatpush1.msra.mxu0 0.0
        %1221 = vmatprep.subr.mxu0 0.0
        %1222 = vmatpush1.msra.mxu0 0.0
        %1223 = vmatprep.subr.mxu0 0.0
        %1224 = vmatpush1.msra.mxu0 %v638
        %1225 = vmatprep.subr.mxu0 0.0
        %1226 = vmatpush1.msra.mxu0 %v633
        %1227 = vmatprep.subr.mxu0 0.0
        %1228 = vmatpush2.msra.mxu0 0.0
        %1229 = vmatprep.subr.mxu0 0.0
        %1230 = vmatpush2.msra.mxu0 0.0
        %1231 = vmatprep.subr.mxu0 0.0
        %1232 = vmatpush2.msra.mxu0 0.0
        %1233 = vmatprep.subr.mxu0 0.0
        %1234 = vmatpush2.msra.mxu0 0.0
        %1235 = vmatprep.subr.mxu0 0.0
        %1236 = vmatpush2.msra.mxu0 0.0
        %1237 = vmatprep.subr.mxu0 0.0
        %1238 = vmatpush2.msra.mxu0 0.0
        %1239 = vmatprep.subr.mxu0 0.0
        %1240 = vmatpush2.msra.mxu0 0.0
        %1241 = vmatprep.subr.mxu0 0.0
        %1242 = vmatpush2.msra.mxu0 0.0
        %1243 = vmatprep.subr.mxu0 0.0
        %1244 = vmatpush2.msra.mxu0 0.0
        %1245 = vmatprep.subr.mxu0 0.0
        %1246 = vmatpush2.msra.mxu0 0.0
        %1247 = vmatprep.subr.mxu0 0.0
        %1248 = vmatpush2.msra.mxu0 0.0
        %1249 = vmatprep.subr.mxu0 0.0
        %1250 = vmatpush2.msra.mxu0 0.0
        %1251 = vmatprep.subr.mxu0 0.0
        %1252 = vmatpush2.msra.mxu0 0.0
        %1253 = vmatprep.subr.mxu0 0.0
        %1254 = vmatpush2.msra.mxu0 0.0
        %1255 = vmatprep.subr.mxu0 0.0
        %1256 = vmatpush2.msra.mxu0 0.0
        %1257 = vmatprep.subr.mxu0 0.0
        %1258 = vmatpush2.msra.mxu0 0.0
        %1259 = vmatprep.mubr.f32.mxu0 0.0
        %1260 = vmatmul.mubr.f32.gmra.mxu0 %v773
        %v1261 = vpop.f32.mrf.mxu0
        %v1262 = vadd.f32 0.0, %v1261
        %v1263 = vpop.f32.mrf.mxu0
        %1264 = vdwg.mxu0
        %1265 = vmatprep.subr.mxu0 0.0
        %1266 = vmatpush1.msra.mxu0 0.0
        %1267 = vmatprep.subr.mxu0 0.0
        %1268 = vmatpush1.msra.mxu0 0.0
        %1269 = vmatprep.subr.mxu0 0.0
        %1270 = vmatpush1.msra.mxu0 0.0
        %1271 = vmatprep.subr.mxu0 0.0
        %1272 = vmatpush1.msra.mxu0 0.0
        %1273 = vmatprep.subr.mxu0 0.0
        %1274 = vmatpush1.msra.mxu0 0.0
        %1275 = vmatprep.subr.mxu0 0.0
        %1276 = vmatpush1.msra.mxu0 0.0
        %1277 = vmatprep.subr.mxu0 0.0
        %1278 = vmatpush1.msra.mxu0 0.0
        %1279 = vmatprep.subr.mxu0 0.0
        %1280 = vmatpush1.msra.mxu0 0.0
        %1281 = vmatprep.subr.mxu0 0.0
        %1282 = vmatpush1.msra.mxu0 0.0
        %1283 = vmatprep.subr.mxu0 0.0
        %1284 = vmatpush1.msra.mxu0 0.0
        %1285 = vmatprep.subr.mxu0 0.0
        %1286 = vmatpush1.msra.mxu0 0.0
        %1287 = vmatprep.subr.mxu0 0.0
        %1288 = vmatpush1.msra.mxu0 0.0
        %1289 = vmatprep.subr.mxu0 0.0
        %1290 = vmatpush1.msra.mxu0 0.0
        %1291 = vmatprep.subr.mxu0 0.0
        %1292 = vmatpush1.msra.mxu0 0.0
        %1293 = vmatprep.subr.mxu0 0.0
        %1294 = vmatpush1.msra.mxu0 %v648
        %1295 = vmatprep.subr.mxu0 0.0
        %1296 = vmatpush1.msra.mxu0 %v643
        %1297 = vmatprep.subr.mxu0 0.0
        %1298 = vmatpush2.msra.mxu0 0.0
        %1299 = vmatprep.subr.mxu0 0.0
        %1300 = vmatpush2.msra.mxu0 0.0
        %1301 = vmatprep.subr.mxu0 0.0
        %1302 = vmatpush2.msra.mxu0 0.0
        %1303 = vmatprep.subr.mxu0 0.0
        %1304 = vmatpush2.msra.mxu0 0.0
        %1305 = vmatprep.subr.mxu0 0.0
        %1306 = vmatpush2.msra.mxu0 0.0
        %1307 = vmatprep.subr.mxu0 0.0
        %1308 = vmatpush2.msra.mxu0 0.0
        %1309 = vmatprep.subr.mxu0 0.0
        %1310 = vmatpush2.msra.mxu0 0.0
        %1311 = vmatprep.subr.mxu0 0.0
        %1312 = vmatpush2.msra.mxu0 0.0
        %1313 = vmatprep.subr.mxu0 0.0
        %1314 = vmatpush2.msra.mxu0 0.0
        %1315 = vmatprep.subr.mxu0 0.0
        %1316 = vmatpush2.msra.mxu0 0.0
        %1317 = vmatprep.subr.mxu0 0.0
        %1318 = vmatpush2.msra.mxu0 0.0
        %1319 = vmatprep.subr.mxu0 0.0
        %1320 = vmatpush2.msra.mxu0 0.0
        %1321 = vmatprep.subr.mxu0 0.0
        %1322 = vmatpush2.msra.mxu0 0.0
        %1323 = vmatprep.subr.mxu0 0.0
        %1324 = vmatpush2.msra.mxu0 0.0
        %1325 = vmatprep.subr.mxu0 0.0
        %1326 = vmatpush2.msra.mxu0 0.0
        %1327 = vmatprep.subr.mxu0 0.0
        %1328 = vmatpush2.msra.mxu0 0.0
        %1329 = vmatprep.mubr.f32.mxu0 0.0
        %1330 = vmatmul.mubr.f32.gmra.mxu0 %v773
        %v1331 = vpop.f32.mrf.mxu0
        %v1332 = vadd.f32 0.0, %v1331
        %v1333 = vpop.f32.mrf.mxu0
        %1334 = vdwg.mxu0
        %1335 = vmatprep.subr.mxu0 0.0
        %1336 = vmatpush1.msra.mxu0 0.0
        %1337 = vmatprep.subr.mxu0 0.0
        %1338 = vmatpush1.msra.mxu0 0.0
        %1339 = vmatprep.subr.mxu0 0.0
        %1340 = vmatpush1.msra.mxu0 0.0
        %1341 = vmatprep.subr.mxu0 0.0
        %1342 = vmatpush1.msra.mxu0 0.0
        %1343 = vmatprep.subr.mxu0 0.0
        %1344 = vmatpush1.msra.mxu0 0.0
        %1345 = vmatprep.subr.mxu0 0.0
        %1346 = vmatpush1.msra.mxu0 0.0
        %1347 = vmatprep.subr.mxu0 0.0
        %1348 = vmatpush1.msra.mxu0 0.0
        %1349 = vmatprep.subr.mxu0 0.0
        %1350 = vmatpush1.msra.mxu0 0.0
        %1351 = vmatprep.subr.mxu0 0.0
        %1352 = vmatpush1.msra.mxu0 0.0
        %1353 = vmatprep.subr.mxu0 0.0
        %1354 = vmatpush1.msra.mxu0 0.0
        %1355 = vmatprep.subr.mxu0 0.0
        %1356 = vmatpush1.msra.mxu0 0.0
        %1357 = vmatprep.subr.mxu0 0.0
        %1358 = vmatpush1.msra.mxu0 0.0
        %1359 = vmatprep.subr.mxu0 0.0
        %1360 = vmatpush1.msra.mxu0 0.0
        %1361 = vmatprep.subr.mxu0 0.0
        %1362 = vmatpush1.msra.mxu0 0.0
        %1363 = vmatprep.subr.mxu0 0.0
        %1364 = vmatpush1.msra.mxu0 %v658
        %1365 = vmatprep.subr.mxu0 0.0
        %1366 = vmatpush1.msra.mxu0 %v653
        %1367 = vmatprep.subr.mxu0 0.0
        %1368 = vmatpush2.msra.mxu0 0.0
        %1369 = vmatprep.subr.mxu0 0.0
        %1370 = vmatpush2.msra.mxu0 0.0
        %1371 = vmatprep.subr.mxu0 0.0
        %1372 = vmatpush2.msra.mxu0 0.0
        %1373 = vmatprep.subr.mxu0 0.0
        %1374 = vmatpush2.msra.mxu0 0.0
        %1375 = vmatprep.subr.mxu0 0.0
        %1376 = vmatpush2.msra.mxu0 0.0
        %1377 = vmatprep.subr.mxu0 0.0
        %1378 = vmatpush2.msra.mxu0 0.0
        %1379 = vmatprep.subr.mxu0 0.0
        %1380 = vmatpush2.msra.mxu0 0.0
        %1381 = vmatprep.subr.mxu0 0.0
        %1382 = vmatpush2.msra.mxu0 0.0
        %1383 = vmatprep.subr.mxu0 0.0
        %1384 = vmatpush2.msra.mxu0 0.0
        %1385 = vmatprep.subr.mxu0 0.0
        %1386 = vmatpush2.msra.mxu0 0.0
        %1387 = vmatprep.subr.mxu0 0.0
        %1388 = vmatpush2.msra.mxu0 0.0
        %1389 = vmatprep.subr.mxu0 0.0
        %1390 = vmatpush2.msra.mxu0 0.0
        %1391 = vmatprep.subr.mxu0 0.0
        %1392 = vmatpush2.msra.mxu0 0.0
        %1393 = vmatprep.subr.mxu0 0.0
        %1394 = vmatpush2.msra.mxu0 0.0
        %1395 = vmatprep.subr.mxu0 0.0
        %1396 = vmatpush2.msra.mxu0 0.0
        %1397 = vmatprep.subr.mxu0 0.0
        %1398 = vmatpush2.msra.mxu0 0.0
        %1399 = vmatprep.mubr.f32.mxu0 0.0
        %1400 = vmatmul.mubr.f32.gmra.mxu0 %v773
        %v1401 = vpop.f32.mrf.mxu0
        %v1402 = vadd.f32 0.0, %v1401
        %v1403 = vpop.f32.mrf.mxu0
        %1404 = vdwg.mxu0
        %1405 = vmatprep.subr.mxu0 0.0
        %1406 = vmatpush1.msra.mxu0 0.0
        %1407 = vmatprep.subr.mxu0 0.0
        %1408 = vmatpush1.msra.mxu0 0.0
        %1409 = vmatprep.subr.mxu0 0.0
        %1410 = vmatpush1.msra.mxu0 0.0
        %1411 = vmatprep.subr.mxu0 0.0
        %1412 = vmatpush1.msra.mxu0 0.0
        %1413 = vmatprep.subr.mxu0 0.0
        %1414 = vmatpush1.msra.mxu0 0.0
        %1415 = vmatprep.subr.mxu0 0.0
        %1416 = vmatpush1.msra.mxu0 0.0
        %1417 = vmatprep.subr.mxu0 0.0
        %1418 = vmatpush1.msra.mxu0 0.0
        %1419 = vmatprep.subr.mxu0 0.0
        %1420 = vmatpush1.msra.mxu0 0.0
        %1421 = vmatprep.subr.mxu0 0.0
        %1422 = vmatpush1.msra.mxu0 0.0
        %1423 = vmatprep.subr.mxu0 0.0
        %1424 = vmatpush1.msra.mxu0 0.0
        %1425 = vmatprep.subr.mxu0 0.0
        %1426 = vmatpush1.msra.mxu0 0.0
        %1427 = vmatprep.subr.mxu0 0.0
        %1428 = vmatpush1.msra.mxu0 0.0
        %1429 = vmatprep.subr.mxu0 0.0
        %1430 = vmatpush1.msra.mxu0 0.0
        %1431 = vmatprep.subr.mxu0 0.0
        %1432 = vmatpush1.msra.mxu0 0.0
        %1433 = vmatprep.subr.mxu0 0.0
        %1434 = vmatpush1.msra.mxu0 %v668
        %1435 = vmatprep.subr.mxu0 0.0
        %1436 = vmatpush1.msra.mxu0 %v663
        %1437 = vmatprep.subr.mxu0 0.0
        %1438 = vmatpush2.msra.mxu0 0.0
        %1439 = vmatprep.subr.mxu0 0.0
        %1440 = vmatpush2.msra.mxu0 0.0
        %1441 = vmatprep.subr.mxu0 0.0
        %1442 = vmatpush2.msra.mxu0 0.0
        %1443 = vmatprep.subr.mxu0 0.0
        %1444 = vmatpush2.msra.mxu0 0.0
        %1445 = vmatprep.subr.mxu0 0.0
        %1446 = vmatpush2.msra.mxu0 0.0
        %1447 = vmatprep.subr.mxu0 0.0
        %1448 = vmatpush2.msra.mxu0 0.0
        %1449 = vmatprep.subr.mxu0 0.0
        %1450 = vmatpush2.msra.mxu0 0.0
        %1451 = vmatprep.subr.mxu0 0.0
        %1452 = vmatpush2.msra.mxu0 0.0
        %1453 = vmatprep.subr.mxu0 0.0
        %1454 = vmatpush2.msra.mxu0 0.0
        %1455 = vmatprep.subr.mxu0 0.0
        %1456 = vmatpush2.msra.mxu0 0.0
        %1457 = vmatprep.subr.mxu0 0.0
        %1458 = vmatpush2.msra.mxu0 0.0
        %1459 = vmatprep.subr.mxu0 0.0
        %1460 = vmatpush2.msra.mxu0 0.0
        %1461 = vmatprep.subr.mxu0 0.0
        %1462 = vmatpush2.msra.mxu0 0.0
        %1463 = vmatprep.subr.mxu0 0.0
        %1464 = vmatpush2.msra.mxu0 0.0
        %1465 = vmatprep.subr.mxu0 0.0
        %1466 = vmatpush2.msra.mxu0 0.0
        %1467 = vmatprep.subr.mxu0 0.0
        %1468 = vmatpush2.msra.mxu0 0.0
        %1469 = vmatprep.mubr.f32.mxu0 0.0
        %1470 = vmatmul.mubr.f32.gmra.mxu0 %v773
        %v1471 = vpop.f32.mrf.mxu0
        %v1472 = vadd.f32 0.0, %v1471
        %v1473 = vpop.f32.mrf.mxu0
        %1474 = vdwg.mxu0
        %1475 = vmatprep.subr.mxu0 0.0
        %1476 = vmatpush1.msra.mxu0 0.0
        %1477 = vmatprep.subr.mxu0 0.0
        %1478 = vmatpush1.msra.mxu0 0.0
        %1479 = vmatprep.subr.mxu0 0.0
        %1480 = vmatpush1.msra.mxu0 0.0
        %1481 = vmatprep.subr.mxu0 0.0
        %1482 = vmatpush1.msra.mxu0 0.0
        %1483 = vmatprep.subr.mxu0 0.0
        %1484 = vmatpush1.msra.mxu0 0.0
        %1485 = vmatprep.subr.mxu0 0.0
        %1486 = vmatpush1.msra.mxu0 0.0
        %1487 = vmatprep.subr.mxu0 0.0
        %1488 = vmatpush1.msra.mxu0 0.0
        %1489 = vmatprep.subr.mxu0 0.0
        %1490 = vmatpush1.msra.mxu0 0.0
        %1491 = vmatprep.subr.mxu0 0.0
        %1492 = vmatpush1.msra.mxu0 0.0
        %1493 = vmatprep.subr.mxu0 0.0
        %1494 = vmatpush1.msra.mxu0 0.0
        %1495 = vmatprep.subr.mxu0 0.0
        %1496 = vmatpush1.msra.mxu0 0.0
        %1497 = vmatprep.subr.mxu0 0.0
        %1498 = vmatpush1.msra.mxu0 0.0
        %1499 = vmatprep.subr.mxu0 0.0
        %1500 = vmatpush1.msra.mxu0 0.0
        %1501 = vmatprep.subr.mxu0 0.0
        %1502 = vmatpush1.msra.mxu0 0.0
        %1503 = vmatprep.subr.mxu0 0.0
        %1504 = vmatpush1.msra.mxu0 %v678
        %1505 = vmatprep.subr.mxu0 0.0
        %1506 = vmatpush1.msra.mxu0 %v673
        %1507 = vmatprep.subr.mxu0 0.0
        %1508 = vmatpush2.msra.mxu0 0.0
        %1509 = vmatprep.subr.mxu0 0.0
        %1510 = vmatpush2.msra.mxu0 0.0
        %1511 = vmatprep.subr.mxu0 0.0
        %1512 = vmatpush2.msra.mxu0 0.0
        %1513 = vmatprep.subr.mxu0 0.0
        %1514 = vmatpush2.msra.mxu0 0.0
        %1515 = vmatprep.subr.mxu0 0.0
        %1516 = vmatpush2.msra.mxu0 0.0
        %1517 = vmatprep.subr.mxu0 0.0
        %1518 = vmatpush2.msra.mxu0 0.0
        %1519 = vmatprep.subr.mxu0 0.0
        %1520 = vmatpush2.msra.mxu0 0.0
        %1521 = vmatprep.subr.mxu0 0.0
        %1522 = vmatpush2.msra.mxu0 0.0
        %1523 = vmatprep.subr.mxu0 0.0
        %1524 = vmatpush2.msra.mxu0 0.0
        %1525 = vmatprep.subr.mxu0 0.0
        %1526 = vmatpush2.msra.mxu0 0.0
        %1527 = vmatprep.subr.mxu0 0.0
        %1528 = vmatpush2.msra.mxu0 0.0
        %1529 = vmatprep.subr.mxu0 0.0
        %1530 = vmatpush2.msra.mxu0 0.0
        %1531 = vmatprep.subr.mxu0 0.0
        %1532 = vmatpush2.msra.mxu0 0.0
        %1533 = vmatprep.subr.mxu0 0.0
        %1534 = vmatpush2.msra.mxu0 0.0
        %1535 = vmatprep.subr.mxu0 0.0
        %1536 = vmatpush2.msra.mxu0 0.0
        %1537 = vmatprep.subr.mxu0 0.0
        %1538 = vmatpush2.msra.mxu0 0.0
        %1539 = vmatprep.mubr.f32.mxu0 0.0
        %1540 = vmatmul.mubr.f32.gmra.mxu0 %v773
        %v1541 = vpop.f32.mrf.mxu0
        %v1542 = vadd.f32 0.0, %v1541
        %v1543 = vpop.f32.mrf.mxu0
        %1544 = vdwg.mxu0
        %1545 = vmatprep.subr.mxu0 0.0
        %1546 = vmatpush1.msra.mxu0 0.0
        %1547 = vmatprep.subr.mxu0 0.0
        %1548 = vmatpush1.msra.mxu0 0.0
        %1549 = vmatprep.subr.mxu0 0.0
        %1550 = vmatpush1.msra.mxu0 0.0
        %1551 = vmatprep.subr.mxu0 0.0
        %1552 = vmatpush1.msra.mxu0 0.0
        %1553 = vmatprep.subr.mxu0 0.0
        %1554 = vmatpush1.msra.mxu0 0.0
        %1555 = vmatprep.subr.mxu0 0.0
        %1556 = vmatpush1.msra.mxu0 0.0
        %1557 = vmatprep.subr.mxu0 0.0
        %1558 = vmatpush1.msra.mxu0 0.0
        %1559 = vmatprep.subr.mxu0 0.0
        %1560 = vmatpush1.msra.mxu0 0.0
        %1561 = vmatprep.subr.mxu0 0.0
        %1562 = vmatpush1.msra.mxu0 0.0
        %1563 = vmatprep.subr.mxu0 0.0
        %1564 = vmatpush1.msra.mxu0 0.0
        %1565 = vmatprep.subr.mxu0 0.0
        %1566 = vmatpush1.msra.mxu0 0.0
        %1567 = vmatprep.subr.mxu0 0.0
        %1568 = vmatpush1.msra.mxu0 0.0
        %1569 = vmatprep.subr.mxu0 0.0
        %1570 = vmatpush1.msra.mxu0 0.0
        %1571 = vmatprep.subr.mxu0 0.0
        %1572 = vmatpush1.msra.mxu0 0.0
        %1573 = vmatprep.subr.mxu0 0.0
        %1574 = vmatpush1.msra.mxu0 %v688
        %1575 = vmatprep.subr.mxu0 0.0
        %1576 = vmatpush1.msra.mxu0 %v683
        %1577 = vmatprep.subr.mxu0 0.0
        %1578 = vmatpush2.msra.mxu0 0.0
        %1579 = vmatprep.subr.mxu0 0.0
        %1580 = vmatpush2.msra.mxu0 0.0
        %1581 = vmatprep.subr.mxu0 0.0
        %1582 = vmatpush2.msra.mxu0 0.0
        %1583 = vmatprep.subr.mxu0 0.0
        %1584 = vmatpush2.msra.mxu0 0.0
        %1585 = vmatprep.subr.mxu0 0.0
        %1586 = vmatpush2.msra.mxu0 0.0
        %1587 = vmatprep.subr.mxu0 0.0
        %1588 = vmatpush2.msra.mxu0 0.0
        %1589 = vmatprep.subr.mxu0 0.0
        %1590 = vmatpush2.msra.mxu0 0.0
        %1591 = vmatprep.subr.mxu0 0.0
        %1592 = vmatpush2.msra.mxu0 0.0
        %1593 = vmatprep.subr.mxu0 0.0
        %1594 = vmatpush2.msra.mxu0 0.0
        %1595 = vmatprep.subr.mxu0 0.0
        %1596 = vmatpush2.msra.mxu0 0.0
        %1597 = vmatprep.subr.mxu0 0.0
        %1598 = vmatpush2.msra.mxu0 0.0
        %1599 = vmatprep.subr.mxu0 0.0
        %1600 = vmatpush2.msra.mxu0 0.0
        %1601 = vmatprep.subr.mxu0 0.0
        %1602 = vmatpush2.msra.mxu0 0.0
        %1603 = vmatprep.subr.mxu0 0.0
        %1604 = vmatpush2.msra.mxu0 0.0
        %1605 = vmatprep.subr.mxu0 0.0
        %1606 = vmatpush2.msra.mxu0 0.0
        %1607 = vmatprep.subr.mxu0 0.0
        %1608 = vmatpush2.msra.mxu0 0.0
        %1609 = vmatprep.mubr.f32.mxu0 0.0
        %1610 = vmatmul.mubr.f32.gmra.mxu0 %v773
        %v1611 = vpop.f32.mrf.mxu0
        %v1612 = vadd.f32 0.0, %v1611
        %v1613 = vpop.f32.mrf.mxu0
        %1614 = vdwg.mxu0
        %1615 = vmatprep.subr.mxu0 0.0
        %1616 = vmatpush1.msra.mxu0 0.0
        %1617 = vmatprep.subr.mxu0 0.0
        %1618 = vmatpush1.msra.mxu0 0.0
        %1619 = vmatprep.subr.mxu0 0.0
        %1620 = vmatpush1.msra.mxu0 0.0
        %1621 = vmatprep.subr.mxu0 0.0
        %1622 = vmatpush1.msra.mxu0 0.0
        %1623 = vmatprep.subr.mxu0 0.0
        %1624 = vmatpush1.msra.mxu0 0.0
        %1625 = vmatprep.subr.mxu0 0.0
        %1626 = vmatpush1.msra.mxu0 0.0
        %1627 = vmatprep.subr.mxu0 0.0
        %1628 = vmatpush1.msra.mxu0 0.0
        %1629 = vmatprep.subr.mxu0 0.0
        %1630 = vmatpush1.msra.mxu0 0.0
        %1631 = vmatprep.subr.mxu0 0.0
        %1632 = vmatpush1.msra.mxu0 0.0
        %1633 = vmatprep.subr.mxu0 0.0
        %1634 = vmatpush1.msra.mxu0 0.0
        %1635 = vmatprep.subr.mxu0 0.0
        %1636 = vmatpush1.msra.mxu0 0.0
        %1637 = vmatprep.subr.mxu0 0.0
        %1638 = vmatpush1.msra.mxu0 0.0
        %1639 = vmatprep.subr.mxu0 0.0
        %1640 = vmatpush1.msra.mxu0 0.0
        %1641 = vmatprep.subr.mxu0 0.0
        %1642 = vmatpush1.msra.mxu0 0.0
        %1643 = vmatprep.subr.mxu0 0.0
        %1644 = vmatpush1.msra.mxu0 %v698
        %1645 = vmatprep.subr.mxu0 0.0
        %1646 = vmatpush1.msra.mxu0 %v693
        %1647 = vmatprep.subr.mxu0 0.0
        %1648 = vmatpush2.msra.mxu0 0.0
        %1649 = vmatprep.subr.mxu0 0.0
        %1650 = vmatpush2.msra.mxu0 0.0
        %1651 = vmatprep.subr.mxu0 0.0
        %1652 = vmatpush2.msra.mxu0 0.0
        %1653 = vmatprep.subr.mxu0 0.0
        %1654 = vmatpush2.msra.mxu0 0.0
        %1655 = vmatprep.subr.mxu0 0.0
        %1656 = vmatpush2.msra.mxu0 0.0
        %1657 = vmatprep.subr.mxu0 0.0
        %1658 = vmatpush2.msra.mxu0 0.0
        %1659 = vmatprep.subr.mxu0 0.0
        %1660 = vmatpush2.msra.mxu0 0.0
        %1661 = vmatprep.subr.mxu0 0.0
        %1662 = vmatpush2.msra.mxu0 0.0
        %1663 = vmatprep.subr.mxu0 0.0
        %1664 = vmatpush2.msra.mxu0 0.0
        %1665 = vmatprep.subr.mxu0 0.0
        %1666 = vmatpush2.msra.mxu0 0.0
        %1667 = vmatprep.subr.mxu0 0.0
        %1668 = vmatpush2.msra.mxu0 0.0
        %1669 = vmatprep.subr.mxu0 0.0
        %1670 = vmatpush2.msra.mxu0 0.0
        %1671 = vmatprep.subr.mxu0 0.0
        %1672 = vmatpush2.msra.mxu0 0.0
        %1673 = vmatprep.subr.mxu0 0.0
        %1674 = vmatpush2.msra.mxu0 0.0
        %1675 = vmatprep.subr.mxu0 0.0
        %1676 = vmatpush2.msra.mxu0 0.0
        %1677 = vmatprep.subr.mxu0 0.0
        %1678 = vmatpush2.msra.mxu0 0.0
        %1679 = vmatprep.mubr.f32.mxu0 0.0
        %1680 = vmatmul.mubr.f32.gmra.mxu0 %v773
        %v1681 = vpop.f32.mrf.mxu0
        %v1682 = vadd.f32 0.0, %v1681
        %v1683 = vpop.f32.mrf.mxu0
        %1684 = vdwg.mxu0
        %1685 = vmatprep.subr.mxu0 0.0
        %1686 = vmatpush1.msra.mxu0 0.0
        %1687 = vmatprep.subr.mxu0 0.0
        %1688 = vmatpush1.msra.mxu0 0.0
        %1689 = vmatprep.subr.mxu0 0.0
        %1690 = vmatpush1.msra.mxu0 0.0
        %1691 = vmatprep.subr.mxu0 0.0
        %1692 = vmatpush1.msra.mxu0 0.0
        %1693 = vmatprep.subr.mxu0 0.0
        %1694 = vmatpush1.msra.mxu0 0.0
        %1695 = vmatprep.subr.mxu0 0.0
        %1696 = vmatpush1.msra.mxu0 0.0
        %1697 = vmatprep.subr.mxu0 0.0
        %1698 = vmatpush1.msra.mxu0 0.0
        %1699 = vmatprep.subr.mxu0 0.0
        %1700 = vmatpush1.msra.mxu0 0.0
        %1701 = vmatprep.subr.mxu0 0.0
        %1702 = vmatpush1.msra.mxu0 0.0
        %1703 = vmatprep.subr.mxu0 0.0
        %1704 = vmatpush1.msra.mxu0 0.0
        %1705 = vmatprep.subr.mxu0 0.0
        %1706 = vmatpush1.msra.mxu0 0.0
        %1707 = vmatprep.subr.mxu0 0.0
        %1708 = vmatpush1.msra.mxu0 0.0
        %1709 = vmatprep.subr.mxu0 0.0
        %1710 = vmatpush1.msra.mxu0 0.0
        %1711 = vmatprep.subr.mxu0 0.0
        %1712 = vmatpush1.msra.mxu0 0.0
        %1713 = vmatprep.subr.mxu0 0.0
        %1714 = vmatpush1.msra.mxu0 %v708
        %1715 = vmatprep.subr.mxu0 0.0
        %1716 = vmatpush1.msra.mxu0 %v703
        %1717 = vmatprep.subr.mxu0 0.0
        %1718 = vmatpush2.msra.mxu0 0.0
        %1719 = vmatprep.subr.mxu0 0.0
        %1720 = vmatpush2.msra.mxu0 0.0
        %1721 = vmatprep.subr.mxu0 0.0
        %1722 = vmatpush2.msra.mxu0 0.0
        %1723 = vmatprep.subr.mxu0 0.0
        %1724 = vmatpush2.msra.mxu0 0.0
        %1725 = vmatprep.subr.mxu0 0.0
        %1726 = vmatpush2.msra.mxu0 0.0
        %1727 = vmatprep.subr.mxu0 0.0
        %1728 = vmatpush2.msra.mxu0 0.0
        %1729 = vmatprep.subr.mxu0 0.0
        %1730 = vmatpush2.msra.mxu0 0.0
        %1731 = vmatprep.subr.mxu0 0.0
        %1732 = vmatpush2.msra.mxu0 0.0
        %1733 = vmatprep.subr.mxu0 0.0
        %1734 = vmatpush2.msra.mxu0 0.0
        %1735 = vmatprep.subr.mxu0 0.0
        %1736 = vmatpush2.msra.mxu0 0.0
        %1737 = vmatprep.subr.mxu0 0.0
        %1738 = vmatpush2.msra.mxu0 0.0
        %1739 = vmatprep.subr.mxu0 0.0
        %1740 = vmatpush2.msra.mxu0 0.0
        %1741 = vmatprep.subr.mxu0 0.0
        %1742 = vmatpush2.msra.mxu0 0.0
        %1743 = vmatprep.subr.mxu0 0.0
        %1744 = vmatpush2.msra.mxu0 0.0
        %1745 = vmatprep.subr.mxu0 0.0
        %1746 = vmatpush2.msra.mxu0 0.0
        %1747 = vmatprep.subr.mxu0 0.0
        %1748 = vmatpush2.msra.mxu0 0.0
        %1749 = vmatprep.mubr.f32.mxu0 0.0
        %1750 = vmatmul.mubr.f32.gmra.mxu0 %v773
        %v1751 = vpop.f32.mrf.mxu0
        %v1752 = vadd.f32 0.0, %v1751
        %v1753 = vpop.f32.mrf.mxu0
        %1754 = vdwg.mxu0
        %1755 = vmatprep.subr.mxu0 0.0
        %1756 = vmatpush1.msra.mxu0 0.0
        %1757 = vmatprep.subr.mxu0 0.0
        %1758 = vmatpush1.msra.mxu0 0.0
        %1759 = vmatprep.subr.mxu0 0.0
        %1760 = vmatpush1.msra.mxu0 0.0
        %1761 = vmatprep.subr.mxu0 0.0
        %1762 = vmatpush1.msra.mxu0 0.0
        %1763 = vmatprep.subr.mxu0 0.0
        %1764 = vmatpush1.msra.mxu0 0.0
        %1765 = vmatprep.subr.mxu0 0.0
        %1766 = vmatpush1.msra.mxu0 0.0
        %1767 = vmatprep.subr.mxu0 0.0
        %1768 = vmatpush1.msra.mxu0 0.0
        %1769 = vmatprep.subr.mxu0 0.0
        %1770 = vmatpush1.msra.mxu0 0.0
        %1771 = vmatprep.subr.mxu0 0.0
        %1772 = vmatpush1.msra.mxu0 0.0
        %1773 = vmatprep.subr.mxu0 0.0
        %1774 = vmatpush1.msra.mxu0 0.0
        %1775 = vmatprep.subr.mxu0 0.0
        %1776 = vmatpush1.msra.mxu0 0.0
        %1777 = vmatprep.subr.mxu0 0.0
        %1778 = vmatpush1.msra.mxu0 0.0
        %1779 = vmatprep.subr.mxu0 0.0
        %1780 = vmatpush1.msra.mxu0 0.0
        %1781 = vmatprep.subr.mxu0 0.0
        %1782 = vmatpush1.msra.mxu0 0.0
        %1783 = vmatprep.subr.mxu0 0.0
        %1784 = vmatpush1.msra.mxu0 %v718
        %1785 = vmatprep.subr.mxu0 0.0
        %1786 = vmatpush1.msra.mxu0 %v713
        %1787 = vmatprep.subr.mxu0 0.0
        %1788 = vmatpush2.msra.mxu0 0.0
        %1789 = vmatprep.subr.mxu0 0.0
        %1790 = vmatpush2.msra.mxu0 0.0
        %1791 = vmatprep.subr.mxu0 0.0
        %1792 = vmatpush2.msra.mxu0 0.0
        %1793 = vmatprep.subr.mxu0 0.0
        %1794 = vmatpush2.msra.mxu0 0.0
        %1795 = vmatprep.subr.mxu0 0.0
        %1796 = vmatpush2.msra.mxu0 0.0
        %1797 = vmatprep.subr.mxu0 0.0
        %1798 = vmatpush2.msra.mxu0 0.0
        %1799 = vmatprep.subr.mxu0 0.0
        %1800 = vmatpush2.msra.mxu0 0.0
        %1801 = vmatprep.subr.mxu0 0.0
        %1802 = vmatpush2.msra.mxu0 0.0
        %1803 = vmatprep.subr.mxu0 0.0
        %1804 = vmatpush2.msra.mxu0 0.0
        %1805 = vmatprep.subr.mxu0 0.0
        %1806 = vmatpush2.msra.mxu0 0.0
        %1807 = vmatprep.subr.mxu0 0.0
        %1808 = vmatpush2.msra.mxu0 0.0
        %1809 = vmatprep.subr.mxu0 0.0
        %1810 = vmatpush2.msra.mxu0 0.0
        %1811 = vmatprep.subr.mxu0 0.0
        %1812 = vmatpush2.msra.mxu0 0.0
        %1813 = vmatprep.subr.mxu0 0.0
        %1814 = vmatpush2.msra.mxu0 0.0
        %1815 = vmatprep.subr.mxu0 0.0
        %1816 = vmatpush2.msra.mxu0 0.0
        %1817 = vmatprep.subr.mxu0 0.0
        %1818 = vmatpush2.msra.mxu0 0.0
        %1819 = vmatprep.mubr.f32.mxu0 0.0
        %1820 = vmatmul.mubr.f32.gmra.mxu0 %v773
        %v1821 = vpop.f32.mrf.mxu0
        %v1822 = vadd.f32 0.0, %v1821
        %v1823 = vpop.f32.mrf.mxu0
        %1824 = vdwg.mxu0
        %1825 = vmatprep.subr.mxu0 0.0
        %1826 = vmatpush1.msra.mxu0 0.0
        %1827 = vmatprep.subr.mxu0 0.0
        %1828 = vmatpush1.msra.mxu0 0.0
        %1829 = vmatprep.subr.mxu0 0.0
        %1830 = vmatpush1.msra.mxu0 0.0
        %1831 = vmatprep.subr.mxu0 0.0
        %1832 = vmatpush1.msra.mxu0 0.0
        %1833 = vmatprep.subr.mxu0 0.0
        %1834 = vmatpush1.msra.mxu0 0.0
        %1835 = vmatprep.subr.mxu0 0.0
        %1836 = vmatpush1.msra.mxu0 0.0
        %1837 = vmatprep.subr.mxu0 0.0
        %1838 = vmatpush1.msra.mxu0 0.0
        %1839 = vmatprep.subr.mxu0 0.0
        %1840 = vmatpush1.msra.mxu0 0.0
        %1841 = vmatprep.subr.mxu0 0.0
        %1842 = vmatpush1.msra.mxu0 0.0
        %1843 = vmatprep.subr.mxu0 0.0
        %1844 = vmatpush1.msra.mxu0 0.0
        %1845 = vmatprep.subr.mxu0 0.0
        %1846 = vmatpush1.msra.mxu0 0.0
        %1847 = vmatprep.subr.mxu0 0.0
        %1848 = vmatpush1.msra.mxu0 0.0
        %1849 = vmatprep.subr.mxu0 0.0
        %1850 = vmatpush1.msra.mxu0 0.0
        %1851 = vmatprep.subr.mxu0 0.0
        %1852 = vmatpush1.msra.mxu0 0.0
        %1853 = vmatprep.subr.mxu0 0.0
        %1854 = vmatpush1.msra.mxu0 %v728
        %1855 = vmatprep.subr.mxu0 0.0
        %1856 = vmatpush1.msra.mxu0 %v723
        %1857 = vmatprep.subr.mxu0 0.0
        %1858 = vmatpush2.msra.mxu0 0.0
        %1859 = vmatprep.subr.mxu0 0.0
        %1860 = vmatpush2.msra.mxu0 0.0
        %1861 = vmatprep.subr.mxu0 0.0
        %1862 = vmatpush2.msra.mxu0 0.0
        %1863 = vmatprep.subr.mxu0 0.0
        %1864 = vmatpush2.msra.mxu0 0.0
        %1865 = vmatprep.subr.mxu0 0.0
        %1866 = vmatpush2.msra.mxu0 0.0
        %1867 = vmatprep.subr.mxu0 0.0
        %1868 = vmatpush2.msra.mxu0 0.0
        %1869 = vmatprep.subr.mxu0 0.0
        %1870 = vmatpush2.msra.mxu0 0.0
        %1871 = vmatprep.subr.mxu0 0.0
        %1872 = vmatpush2.msra.mxu0 0.0
        %1873 = vmatprep.subr.mxu0 0.0
        %1874 = vmatpush2.msra.mxu0 0.0
        %1875 = vmatprep.subr.mxu0 0.0
        %1876 = vmatpush2.msra.mxu0 0.0
        %1877 = vmatprep.subr.mxu0 0.0
        %1878 = vmatpush2.msra.mxu0 0.0
        %1879 = vmatprep.subr.mxu0 0.0
        %1880 = vmatpush2.msra.mxu0 0.0
        %1881 = vmatprep.subr.mxu0 0.0
        %1882 = vmatpush2.msra.mxu0 0.0
        %1883 = vmatprep.subr.mxu0 0.0
        %1884 = vmatpush2.msra.mxu0 0.0
        %1885 = vmatprep.subr.mxu0 0.0
        %1886 = vmatpush2.msra.mxu0 0.0
        %1887 = vmatprep.subr.mxu0 0.0
        %1888 = vmatpush2.msra.mxu0 0.0
        %1889 = vmatprep.mubr.f32.mxu0 0.0
        %1890 = vmatmul.mubr.f32.gmra.mxu0 %v773
        %v1891 = vpop.f32.mrf.mxu0
        %v1892 = vadd.f32 0.0, %v1891
        %v1893 = vpop.f32.mrf.mxu0
        %1894 = vdwg.mxu0
        %1895 = vmatprep.subr.mxu0 0.0
        %1896 = vmatpush1.msra.mxu0 0.0
        %1897 = vmatprep.subr.mxu0 0.0
        %1898 = vmatpush1.msra.mxu0 0.0
        %1899 = vmatprep.subr.mxu0 0.0
        %1900 = vmatpush1.msra.mxu0 0.0
        %1901 = vmatprep.subr.mxu0 0.0
        %1902 = vmatpush1.msra.mxu0 0.0
        %1903 = vmatprep.subr.mxu0 0.0
        %1904 = vmatpush1.msra.mxu0 0.0
        %1905 = vmatprep.subr.mxu0 0.0
        %1906 = vmatpush1.msra.mxu0 0.0
        %1907 = vmatprep.subr.mxu0 0.0
        %1908 = vmatpush1.msra.mxu0 0.0
        %1909 = vmatprep.subr.mxu0 0.0
        %1910 = vmatpush1.msra.mxu0 0.0
        %1911 = vmatprep.subr.mxu0 0.0
        %1912 = vmatpush1.msra.mxu0 0.0
        %1913 = vmatprep.subr.mxu0 0.0
        %1914 = vmatpush1.msra.mxu0 0.0
        %1915 = vmatprep.subr.mxu0 0.0
        %1916 = vmatpush1.msra.mxu0 0.0
        %1917 = vmatprep.subr.mxu0 0.0
        %1918 = vmatpush1.msra.mxu0 0.0
        %1919 = vmatprep.subr.mxu0 0.0
        %1920 = vmatpush1.msra.mxu0 0.0
        %1921 = vmatprep.subr.mxu0 0.0
        %1922 = vmatpush1.msra.mxu0 0.0
        %1923 = vmatprep.subr.mxu0 0.0
        %1924 = vmatpush1.msra.mxu0 %v738
        %1925 = vmatprep.subr.mxu0 0.0
        %1926 = vmatpush1.msra.mxu0 %v733
        %1927 = vmatprep.subr.mxu0 0.0
        %1928 = vmatpush2.msra.mxu0 0.0
        %1929 = vmatprep.subr.mxu0 0.0
        %1930 = vmatpush2.msra.mxu0 0.0
        %1931 = vmatprep.subr.mxu0 0.0
        %1932 = vmatpush2.msra.mxu0 0.0
        %1933 = vmatprep.subr.mxu0 0.0
        %1934 = vmatpush2.msra.mxu0 0.0
        %1935 = vmatprep.subr.mxu0 0.0
        %1936 = vmatpush2.msra.mxu0 0.0
        %1937 = vmatprep.subr.mxu0 0.0
        %1938 = vmatpush2.msra.mxu0 0.0
        %1939 = vmatprep.subr.mxu0 0.0
        %1940 = vmatpush2.msra.mxu0 0.0
        %1941 = vmatprep.subr.mxu0 0.0
        %1942 = vmatpush2.msra.mxu0 0.0
        %1943 = vmatprep.subr.mxu0 0.0
        %1944 = vmatpush2.msra.mxu0 0.0
        %1945 = vmatprep.subr.mxu0 0.0
        %1946 = vmatpush2.msra.mxu0 0.0
        %1947 = vmatprep.subr.mxu0 0.0
        %1948 = vmatpush2.msra.mxu0 0.0
        %1949 = vmatprep.subr.mxu0 0.0
        %1950 = vmatpush2.msra.mxu0 0.0
        %1951 = vmatprep.subr.mxu0 0.0
        %1952 = vmatpush2.msra.mxu0 0.0
        %1953 = vmatprep.subr.mxu0 0.0
        %1954 = vmatpush2.msra.mxu0 0.0
        %1955 = vmatprep.subr.mxu0 0.0
        %1956 = vmatpush2.msra.mxu0 0.0
        %1957 = vmatprep.subr.mxu0 0.0
        %1958 = vmatpush2.msra.mxu0 0.0
        %1959 = vmatprep.mubr.f32.mxu0 0.0
        %1960 = vmatmul.mubr.f32.gmra.mxu0 %v773
        %v1961 = vpop.f32.mrf.mxu0
        %v1962 = vadd.f32 0.0, %v1961
        %v1963 = vpop.f32.mrf.mxu0
        %1964 = vdwg.mxu0
        %1965 = vmatprep.subr.mxu0 0.0
        %1966 = vmatpush1.msra.mxu0 0.0
        %1967 = vmatprep.subr.mxu0 0.0
        %1968 = vmatpush1.msra.mxu0 0.0
        %1969 = vmatprep.subr.mxu0 0.0
        %1970 = vmatpush1.msra.mxu0 0.0
        %1971 = vmatprep.subr.mxu0 0.0
        %1972 = vmatpush1.msra.mxu0 0.0
        %1973 = vmatprep.subr.mxu0 0.0
        %1974 = vmatpush1.msra.mxu0 0.0
        %1975 = vmatprep.subr.mxu0 0.0
        %1976 = vmatpush1.msra.mxu0 0.0
        %1977 = vmatprep.subr.mxu0 0.0
        %1978 = vmatpush1.msra.mxu0 0.0
        %1979 = vmatprep.subr.mxu0 0.0
        %1980 = vmatpush1.msra.mxu0 0.0
        %1981 = vmatprep.subr.mxu0 0.0
        %1982 = vmatpush1.msra.mxu0 0.0
        %1983 = vmatprep.subr.mxu0 0.0
        %1984 = vmatpush1.msra.mxu0 0.0
        %1985 = vmatprep.subr.mxu0 0.0
        %1986 = vmatpush1.msra.mxu0 0.0
        %1987 = vmatprep.subr.mxu0 0.0
        %1988 = vmatpush1.msra.mxu0 0.0
        %1989 = vmatprep.subr.mxu0 0.0
        %1990 = vmatpush1.msra.mxu0 0.0
        %1991 = vmatprep.subr.mxu0 0.0
        %1992 = vmatpush1.msra.mxu0 0.0
        %1993 = vmatprep.subr.mxu0 0.0
        %1994 = vmatpush1.msra.mxu0 %v748
        %1995 = vmatprep.subr.mxu0 0.0
        %1996 = vmatpush1.msra.mxu0 %v743
        %1997 = vmatprep.subr.mxu0 0.0
        %1998 = vmatpush2.msra.mxu0 0.0
        %1999 = vmatprep.subr.mxu0 0.0
        %2000 = vmatpush2.msra.mxu0 0.0
        %2001 = vmatprep.subr.mxu0 0.0
        %2002 = vmatpush2.msra.mxu0 0.0
        %2003 = vmatprep.subr.mxu0 0.0
        %2004 = vmatpush2.msra.mxu0 0.0
        %2005 = vmatprep.subr.mxu0 0.0
        %2006 = vmatpush2.msra.mxu0 0.0
        %2007 = vmatprep.subr.mxu0 0.0
        %2008 = vmatpush2.msra.mxu0 0.0
        %2009 = vmatprep.subr.mxu0 0.0
        %2010 = vmatpush2.msra.mxu0 0.0
        %2011 = vmatprep.subr.mxu0 0.0
        %2012 = vmatpush2.msra.mxu0 0.0
        %2013 = vmatprep.subr.mxu0 0.0
        %2014 = vmatpush2.msra.mxu0 0.0
        %2015 = vmatprep.subr.mxu0 0.0
        %2016 = vmatpush2.msra.mxu0 0.0
        %2017 = vmatprep.subr.mxu0 0.0
        %2018 = vmatpush2.msra.mxu0 0.0
        %2019 = vmatprep.subr.mxu0 0.0
        %2020 = vmatpush2.msra.mxu0 0.0
        %2021 = vmatprep.subr.mxu0 0.0
        %2022 = vmatpush2.msra.mxu0 0.0
        %2023 = vmatprep.subr.mxu0 0.0
        %2024 = vmatpush2.msra.mxu0 0.0
        %2025 = vmatprep.subr.mxu0 0.0
        %2026 = vmatpush2.msra.mxu0 0.0
        %2027 = vmatprep.subr.mxu0 0.0
        %2028 = vmatpush2.msra.mxu0 0.0
        %2029 = vmatprep.mubr.f32.mxu0 0.0
        %2030 = vmatmul.mubr.f32.gmra.mxu0 %v773
        %v2031 = vpop.f32.mrf.mxu0
        %v2032 = vadd.f32 0.0, %v2031
        %v2033 = vpop.f32.mrf.mxu0
        %2034 = vdwg.mxu0
        %2035 = vmatprep.subr.mxu0 0.0
        %2036 = vmatpush1.msra.mxu0 0.0
        %2037 = vmatprep.subr.mxu0 0.0
        %2038 = vmatpush1.msra.mxu0 0.0
        %2039 = vmatprep.subr.mxu0 0.0
        %2040 = vmatpush1.msra.mxu0 0.0
        %2041 = vmatprep.subr.mxu0 0.0
        %2042 = vmatpush1.msra.mxu0 0.0
        %2043 = vmatprep.subr.mxu0 0.0
        %2044 = vmatpush1.msra.mxu0 0.0
        %2045 = vmatprep.subr.mxu0 0.0
        %2046 = vmatpush1.msra.mxu0 0.0
        %2047 = vmatprep.subr.mxu0 0.0
        %2048 = vmatpush1.msra.mxu0 0.0
        %2049 = vmatprep.subr.mxu0 0.0
        %2050 = vmatpush1.msra.mxu0 0.0
        %2051 = vmatprep.subr.mxu0 0.0
        %2052 = vmatpush1.msra.mxu0 0.0
        %2053 = vmatprep.subr.mxu0 0.0
        %2054 = vmatpush1.msra.mxu0 0.0
        %2055 = vmatprep.subr.mxu0 0.0
        %2056 = vmatpush1.msra.mxu0 0.0
        %2057 = vmatprep.subr.mxu0 0.0
        %2058 = vmatpush1.msra.mxu0 0.0
        %2059 = vmatprep.subr.mxu0 0.0
        %2060 = vmatpush1.msra.mxu0 0.0
        %2061 = vmatprep.subr.mxu0 0.0
        %2062 = vmatpush1.msra.mxu0 0.0
        %2063 = vmatprep.subr.mxu0 0.0
        %2064 = vmatpush1.msra.mxu0 %v758
        %2065 = vmatprep.subr.mxu0 0.0
        %2066 = vmatpush1.msra.mxu0 %v753
        %2067 = vmatprep.subr.mxu0 0.0
        %2068 = vmatpush2.msra.mxu0 0.0
        %2069 = vmatprep.subr.mxu0 0.0
        %2070 = vmatpush2.msra.mxu0 0.0
        %2071 = vmatprep.subr.mxu0 0.0
        %2072 = vmatpush2.msra.mxu0 0.0
        %2073 = vmatprep.subr.mxu0 0.0
        %2074 = vmatpush2.msra.mxu0 0.0
        %2075 = vmatprep.subr.mxu0 0.0
        %2076 = vmatpush2.msra.mxu0 0.0
        %2077 = vmatprep.subr.mxu0 0.0
        %2078 = vmatpush2.msra.mxu0 0.0
        %2079 = vmatprep.subr.mxu0 0.0
        %2080 = vmatpush2.msra.mxu0 0.0
        %2081 = vmatprep.subr.mxu0 0.0
        %2082 = vmatpush2.msra.mxu0 0.0
        %2083 = vmatprep.subr.mxu0 0.0
        %2084 = vmatpush2.msra.mxu0 0.0
        %2085 = vmatprep.subr.mxu0 0.0
        %2086 = vmatpush2.msra.mxu0 0.0
        %2087 = vmatprep.subr.mxu0 0.0
        %2088 = vmatpush2.msra.mxu0 0.0
        %2089 = vmatprep.subr.mxu0 0.0
        %2090 = vmatpush2.msra.mxu0 0.0
        %2091 = vmatprep.subr.mxu0 0.0
        %2092 = vmatpush2.msra.mxu0 0.0
        %2093 = vmatprep.subr.mxu0 0.0
        %2094 = vmatpush2.msra.mxu0 0.0
        %2095 = vmatprep.subr.mxu0 0.0
        %2096 = vmatpush2.msra.mxu0 0.0
        %2097 = vmatprep.subr.mxu0 0.0
        %2098 = vmatpush2.msra.mxu0 0.0
        %2099 = vmatprep.mubr.f32.mxu0 0.0
        %2100 = vmatmul.mubr.f32.gmra.mxu0 %v773
        %v2101 = vpop.f32.mrf.mxu0
        %v2102 = vadd.f32 0.0, %v2101
        %v2103 = vpop.f32.mrf.mxu0
        %2104 = vdwg.mxu0
        %2105 = vmatprep.subr.mxu0 0.0
        %2106 = vmatpush1.msra.mxu0 0.0
        %2107 = vmatprep.subr.mxu0 0.0
        %2108 = vmatpush1.msra.mxu0 0.0
        %2109 = vmatprep.subr.mxu0 0.0
        %2110 = vmatpush1.msra.mxu0 0.0
        %2111 = vmatprep.subr.mxu0 0.0
        %2112 = vmatpush1.msra.mxu0 0.0
        %2113 = vmatprep.subr.mxu0 0.0
        %2114 = vmatpush1.msra.mxu0 0.0
        %2115 = vmatprep.subr.mxu0 0.0
        %2116 = vmatpush1.msra.mxu0 0.0
        %2117 = vmatprep.subr.mxu0 0.0
        %2118 = vmatpush1.msra.mxu0 0.0
        %2119 = vmatprep.subr.mxu0 0.0
        %2120 = vmatpush1.msra.mxu0 0.0
        %2121 = vmatprep.subr.mxu0 0.0
        %2122 = vmatpush1.msra.mxu0 0.0
        %2123 = vmatprep.subr.mxu0 0.0
        %2124 = vmatpush1.msra.mxu0 0.0
        %2125 = vmatprep.subr.mxu0 0.0
        %2126 = vmatpush1.msra.mxu0 0.0
        %2127 = vmatprep.subr.mxu0 0.0
        %2128 = vmatpush1.msra.mxu0 0.0
        %2129 = vmatprep.subr.mxu0 0.0
        %2130 = vmatpush1.msra.mxu0 0.0
        %2131 = vmatprep.subr.mxu0 0.0
        %2132 = vmatpush1.msra.mxu0 0.0
        %2133 = vmatprep.subr.mxu0 0.0
        %2134 = vmatpush1.msra.mxu0 %v768
        %2135 = vmatprep.subr.mxu0 0.0
        %2136 = vmatpush1.msra.mxu0 %v763
        %2137 = vmatprep.subr.mxu0 0.0
        %2138 = vmatpush2.msra.mxu0 0.0
        %2139 = vmatprep.subr.mxu0 0.0
        %2140 = vmatpush2.msra.mxu0 0.0
        %2141 = vmatprep.subr.mxu0 0.0
        %2142 = vmatpush2.msra.mxu0 0.0
        %2143 = vmatprep.subr.mxu0 0.0
        %2144 = vmatpush2.msra.mxu0 0.0
        %2145 = vmatprep.subr.mxu0 0.0
        %2146 = vmatpush2.msra.mxu0 0.0
        %2147 = vmatprep.subr.mxu0 0.0
        %2148 = vmatpush2.msra.mxu0 0.0
        %2149 = vmatprep.subr.mxu0 0.0
        %2150 = vmatpush2.msra.mxu0 0.0
        %2151 = vmatprep.subr.mxu0 0.0
        %2152 = vmatpush2.msra.mxu0 0.0
        %2153 = vmatprep.subr.mxu0 0.0
        %2154 = vmatpush2.msra.mxu0 0.0
        %2155 = vmatprep.subr.mxu0 0.0
        %2156 = vmatpush2.msra.mxu0 0.0
        %2157 = vmatprep.subr.mxu0 0.0
        %2158 = vmatpush2.msra.mxu0 0.0
        %2159 = vmatprep.subr.mxu0 0.0
        %2160 = vmatpush2.msra.mxu0 0.0
        %2161 = vmatprep.subr.mxu0 0.0
        %2162 = vmatpush2.msra.mxu0 0.0
        %2163 = vmatprep.subr.mxu0 0.0
        %2164 = vmatpush2.msra.mxu0 0.0
        %2165 = vmatprep.subr.mxu0 0.0
        %2166 = vmatpush2.msra.mxu0 0.0
        %2167 = vmatprep.subr.mxu0 0.0
        %2168 = vmatpush2.msra.mxu0 0.0
        %2169 = vmatprep.mubr.f32.mxu0 0.0
        %2170 = vmatmul.mubr.f32.gmra.mxu0 %v773
        %v2171 = vpop.f32.mrf.mxu0
        %v2172 = vadd.f32 0.0, %v2171
        %v2173 = vpop.f32.mrf.mxu0
        %2174 = vdwg.mxu0
        %v2175 = vmul.f32 %v842, %v842
        %v2176 = vmul.f32 %v912, %v912
        %v2177 = vmul.f32 %v982, %v982
        %v2178 = vmul.f32 %v1052, %v1052
        %v2179 = vmul.f32 %v1122, %v1122
        %v2180 = vmul.f32 %v1192, %v1192
        %v2181 = vmul.f32 %v1262, %v1262
        %v2182 = vmul.f32 %v1332, %v1332
        %v2183 = vmul.f32 %v842, %v1122
        %v2184 = vmul.f32 %v912, %v1192
        %v2185 = vmul.f32 %v982, %v1262
        %v2186 = vmul.f32 %v1052, %v1332
        %v2187 = vmul.f32 %v2183, 2.0
        %v2188 = vmul.f32 %v2184, 2.0
        %v2189 = vmul.f32 %v2185, 2.0
        %v2190 = vmul.f32 %v2186, 2.0
        %v2191 = vadd.f32 %v2187, 0.0001
        %v2192 = vadd.f32 %v2188, 0.0001
        %v2193 = vadd.f32 %v2189, 0.0001
        %v2194 = vadd.f32 %v2190, 0.0001
        %v2195 = vsub.f32 %v1962, %v2183
        %v2196 = vsub.f32 %v2032, %v2184
        %v2197 = vsub.f32 %v2102, %v2185
        %v2198 = vsub.f32 %v2172, %v2186
        %v2199 = vmul.f32 %v2195, 2.0
        %v2200 = vmul.f32 %v2196, 2.0
        %v2201 = vmul.f32 %v2197, 2.0
        %v2202 = vmul.f32 %v2198, 2.0
        %v2203 = vadd.f32 %v2199, 0.0009
        %v2204 = vadd.f32 %v2200, 0.0009
        %v2205 = vadd.f32 %v2201, 0.0009
        %v2206 = vadd.f32 %v2202, 0.0009
        %v2207 = vmul.f32 %v2191, %v2203
        %v2208 = vmul.f32 %v2192, %v2204
        %v2209 = vmul.f32 %v2193, %v2205
        %v2210 = vmul.f32 %v2194, %v2206
        %v2211 = vadd.f32 %v2175, %v2179
        %v2212 = vadd.f32 %v2176, %v2180
        %v2213 = vadd.f32 %v2177, %v2181
        %v2214 = vadd.f32 %v2178, %v2182
        %v2215 = vadd.f32 %v2211, 0.0001
        %v2216 = vadd.f32 %v2212, 0.0001
        %v2217 = vadd.f32 %v2213, 0.0001
        %v2218 = vadd.f32 %v2214, 0.0001
        %v2219 = vsub.f32 %v1402, %v2175
        %v2220 = vsub.f32 %v1472, %v2176
        %v2221 = vsub.f32 %v1542, %v2177
        %v2222 = vsub.f32 %v1612, %v2178
        %v2223 = vsub.f32 %v1682, %v2179
        %v2224 = vsub.f32 %v1752, %v2180
        %v2225 = vsub.f32 %v1822, %v2181
        %v2226 = vsub.f32 %v1892, %v2182
        %v2227 = vadd.f32 %v2219, %v2223
        %v2228 = vadd.f32 %v2220, %v2224
        %v2229 = vadd.f32 %v2221, %v2225
        %v2230 = vadd.f32 %v2222, %v2226
        %v2231 = vadd.f32 %v2227, 0.0009
        %v2232 = vadd.f32 %v2228, 0.0009
        %v2233 = vadd.f32 %v2229, 0.0009
        %v2234 = vadd.f32 %v2230, 0.0009
        %v2235 = vmul.f32 %v2215, %v2231
        %v2236 = vmul.f32 %v2216, %v2232
        %v2237 = vmul.f32 %v2217, %v2233
        %v2238 = vmul.f32 %v2218, %v2234
        %v2239 = vrcp.pop %v2235
        %v2240 = vrcp.pop %v2236
        %v2241 = vrcp.pop %v2237
        %v2242 = vrcp.pop %v2238
        %v2243 = vmul.f32 %v2235, %v2239
        %v2244 = vmul.f32 %v2236, %v2240
        %v2245 = vmul.f32 %v2237, %v2241
        %v2246 = vmul.f32 %v2238, %v2242
        %v2247 = vsub.f32 2.0, %v2243
        %v2248 = vsub.f32 2.0, %v2244
        %v2249 = vsub.f32 2.0, %v2245
        %v2250 = vsub.f32 2.0, %v2246
        %v2251 = vmul.f32 %v2239, %v2247
        %v2252 = vmul.f32 %v2240, %v2248
        %v2253 = vmul.f32 %v2241, %v2249
        %v2254 = vmul.f32 %v2242, %v2250
        %v2255 = vmul.f32 %v2207, %v2251
        %v2256 = vmul.f32 %v2208, %v2252
        %v2257 = vmul.f32 %v2209, %v2253
        %v2258 = vmul.f32 %v2210, %v2254
        %vm2259 = vcmask 46080
        %v2260 = vsel %vm2259, %v2255, 0.0
        %2261 = vadd.xlane.f32.xlu0 %v2260
        %v2262 = vpop.xlane.xlu0 %2261
        %v2263 = vsel %vm2259, %v2256, 0.0
        %2264 = vadd.xlane.f32.xlu0 %v2263
        %v2265 = vpop.xlane.xlu0 %2264
        %v2266 = vsel %vm2259, %v2257, 0.0
        %2267 = vadd.xlane.f32.xlu0 %v2266
        %v2268 = vpop.xlane.xlu0 %2267
        %v2269 = vsel %vm2259, %v2258, 0.0
        %2270 = vadd.xlane.f32.xlu0 %v2269
        %v2271 = vpop.xlane.xlu0 %2270
        %v2276 = vlaneseq
        %v2277 = vand.u32 %v2276, 127
        %v2278 = vlaneseq
        %v2279 = vshrl.u32 %v2278, 7
        %v2280 = vsub.s32 %v2277, %v2279
        %v2281 = vrot.slane %v2262, %v2280
        %v2282 = vlaneseq
        %v2283 = vshrl.u32 %v2282, 7
        %v2284 = vsub.s32 %v2277, %v2283
        %v2285 = vrot.slane %v2265, %v2284
        %v2286 = vlaneseq
        %v2287 = vshrl.u32 %v2286, 7
        %v2288 = vsub.s32 %v2277, %v2287
        %v2289 = vrot.slane %v2268, %v2288
        %v2290 = vlaneseq
        %v2291 = vshrl.u32 %v2290, 7
        %v2292 = vsub.s32 %v2277, %v2291
        %v2293 = vrot.slane %v2271, %v2292
        %vm2294 = vcmask 1041409
        %v2295 = vsel %vm2294, %v2285, %v2281
        %vm2296 = vcmask 1042434
        %v2297 = vsel %vm2296, %v2289, %v2295
        %vm2298 = vcmask 1043459
        %v2299 = vsel %vm2298, %v2293, %v2297
        %vm2301 = vcmask 44032
        %v2302 = vsel %vm2301, %v2299, 0.0
        %2303 = vadd.xlane.f32.xlu0 %v2302
        %v2304 = vpop.xlane.xlu0 %2303
        %v2306 = vlaneseq
        %v2307 = vshrl.u32 %v2306, 7
        %v2308 = vsub.s32 %v2277, %v2307
        %v2309 = vrot.slane %v2304, %v2308
        %vm2311 = vcmask 24576
        %2312 = vst.msk [vmem:[%s256] sm:$0x1] %vm2311, %v2309
        %s2313 = sand.u32 %s126, 1
        %s2314 = scalar_lea.sflag [#allocation5], %s2313
        %s2315 = sand.u32 %s126, 1
        %s2316 = scalar_lea.vmem [#allocation8], %s2315
        // Predicated region
        $region45: #{tpu_custom_call.1} parent=35 // pred_check
          %p2317 = pneg %p136
        $region46: #{tpu_custom_call.1} parent=35 // pred_check_branch
          %2319 = sbr.rel (%p2317) target = $region48
        $region47: #{tpu_custom_call.1} parent=35 // pred_region
          %s2321 = ssub.s32 16, 16
          %2322 = vsyncadd %s2314, %s2321
          %s2323 = smul.addr %s24, 16
          %s2324 = scalar_lea.hbm %s4, %s2323
          %s2326 = sshll.u32 %s2316, 4
          %s2327 = int_to_ptr.vmem [resolvable:$true] %s2326
          %2329 = dma.vmem_to_hbm [thread:$0]  %s2327, 16, %s2324, %s2314
        $region48: #{tpu_custom_call.1} parent=35 // pred_fallthru
          _
      $region36: #{tpu_custom_call.1} parent=5 // pred_fallthru
        _
      %p2330 = scmp.le.s32.totalorder 2, %s19
      // Predicated region
      $region49: #{tpu_custom_call.1} parent=5 // pred_check
        %p2331 = pneg %p2330
      $region50: #{tpu_custom_call.1} parent=5 // pred_check_branch
        %2333 = sbr.rel (%p2331) target = $region52
      $region51: #{tpu_custom_call.1} parent=5 // pred_region
        %s2334 = ssub.s32 %s19, 2
        // Predicated region
        $region53: #{tpu_custom_call.1} parent=51 // pred_check
          %p2335 = pneg %p142
        $region54: #{tpu_custom_call.1} parent=51 // pred_check_branch
          %2337 = sbr.rel (%p2335) target = $region56
        $region55: #{tpu_custom_call.1} parent=51 // pred_region
          %s2338 = sand.u32 %s127, 1
          %s2339 = scalar_lea.sflag [#allocation5], %s2338
          %s2340 = sand.u32 %s127, 1
          %s2341 = scalar_lea.vmem [#allocation8], %s2340
          %2342 = dma.done %s2339, 16
        $region56: #{tpu_custom_call.1} parent=51 // pred_fallthru
          _
      $region52: #{tpu_custom_call.1} parent=5 // pred_fallthru
        _
    $region6: #{tpu_custom_call.1} parent=1 // loop_footer
      %s23 = sadd.s32 1, %s19
    $region7: #{tpu_custom_call.1} parent=1 // loop_footer_branch
      %18 = sbr.rel target = $region3
    $region8: #{tpu_custom_call.1} parent=1 // loop_exit
      _
    %2343 = vsyncpa [#allocation4], 1
    %s2344 = scalar_lea.sflag [#allocation4], 1
    %2345 = vsyncpa %s2344, 1
    %2346 = vsyncpa [#allocation7], 1
    %s2347 = scalar_lea.sflag [#allocation7], 1
    %2348 = vsyncpa %s2347, 1
    %2349 = vsyncpa [#allocation5], 1
    %s2350 = scalar_lea.sflag [#allocation5], 1
    %2351 = vsyncpa %s2350, 1

</llo_original>
